<compile_context>
chip_gen: v6e
topology: v6e:2x2x1
jax: 0.10.0
libtpu: 0.0.40
codegen_flags: <defaults>
</compile_context>

<pallas_src>
import functools

import numpy as np

import jax
import jax.numpy as jnp
from jax.experimental import pallas as pl
from jax.experimental.pallas import tpu as pltpu


def _round_up(x, m):
    return ((x + m - 1) // m) * m


def _default_tm():
    try:
        kind = jax.devices()[0].device_kind.lower()
    except Exception:
        kind = ""
    # 128x128 MXU on v5e -> 128-row frame tiles; 256x256 MXU on v6e/v7x -> 256.
    return 128 if "v5" in kind else 256


def _vmem_cap_bytes():
    # Generation-aware VMEM budget (v5e/v6e: 128 MiB, v7x: 64 MiB), ~20% headroom.
    try:
        cap = pltpu.get_tpu_info().vmem_capacity_bytes
    except Exception:
        cap = 128 << 20
    return int(cap * 0.8)


# ----------------------------------------------------------------------------
# Pallas kernel: one tile of tm frames -> (freq, time)-layout re / im / mag
# ----------------------------------------------------------------------------
def _stft_kernel(rows_ref, halo_ref, basis_ref, *out_refs,
                 n_shift, hop, fp, want_cplx, want_mag, compute_dtype):
    """rows_ref : (1, tm, hop)        hop-sized rows of the padded signal (f32)
       halo_ref : (1, 1, n_halo, hop) the rows following this tile (f32)
       basis_ref: (n_shift*hop, 2*fp) window-folded [cos | -sin] DFT basis
       out_refs : requested subset of (re, im, mag), each (1, fp, tm)
                  -- already in the final frequency-major / time-minor layout."""
    main = rows_ref[0]                              # (tm, hop)
    tm = main.shape[0]
    if n_shift > 1:
        # aligned concat (offset tm is a multiple of 128); shifted frame views
        # are then cheap static sublane-shift slices of the value.
        sup = jnp.concatenate([main, halo_ref[0, 0]], axis=0)   # (tm + n_halo, hop)
    else:
        sup = main

    acc = None
    for s in range(n_shift):                        # frame t = rows t, t+1, ..., t+n_shift-1
        sub = sup[s:s + tm]                         # (tm, hop)
        part = jnp.dot(sub.astype(compute_dtype),
                       basis_ref[s * hop:(s + 1) * hop, :],
                       preferred_element_type=jnp.float32)      # (tm, 2*fp) f32 acc
        acc = part if acc is None else acc + part

    yt = acc.T                                      # (2*fp, tm): emit (F, T) layout directly
    re = yt[:fp]
    im = yt[fp:]
    j = 0
    if want_cplx:
        out_refs[j][0] = re.astype(out_refs[j].dtype)
        out_refs[j + 1][0] = im.astype(out_refs[j + 1].dtype)
        j += 2
    if want_mag:
        # torch: mag = (re^2 + im^2 + eps) ** 0.5 with eps = 1e-7
        out_refs[j][0] = jnp.sqrt(re * re + im * im + 1e-7).astype(out_refs[j].dtype)


def _stft_tiles_pallas(rows, halo, basis, *, n_shift, fp, want_cplx, want_mag,
                       tm, out_dtype, compute_dtype):
    """rows: (N, Tp, hop) f32; halo: (N, Tp//tm, n_halo, hop) f32;
       basis: (n_shift*hop, 2*fp).  Returns requested subset of (re, im, mag),
       each (N, fp, Tp) in out_dtype (frequency-major)."""
    N, Tp, hop = rows.shape
    n_tiles = Tp // tm
    n_halo = halo.shape[2]
    W, cp = basis.shape
    assert cp == 2 * fp and W == n_shift * hop and Tp % tm == 0

    n_out = (2 if want_cplx else 0) + (1 if want_mag else 0)
    assert n_out > 0
    out_size = jnp.dtype(out_dtype).itemsize

    vmem_need = (2 * basis.size * basis.dtype.itemsize      # resident basis (dbl-buffered)
                 + 2 * tm * hop * rows.dtype.itemsize       # frame-row tiles
                 + 2 * n_halo * hop * halo.dtype.itemsize   # halo rows
                 + 2 * n_out * fp * tm * out_size           # output tiles
                 + 3 * tm * cp * 4                          # f32 accumulator / transpose
                 + (4 << 20))
    vmem_limit = int(min(max(vmem_need, 16 << 20), _vmem_cap_bytes()))

    kernel = functools.partial(_stft_kernel, n_shift=n_shift, hop=hop, fp=fp,
                               want_cplx=want_cplx, want_mag=want_mag,
                               compute_dtype=compute_dtype)

    outs = pl.pallas_call(
        kernel,
        out_shape=[jax.ShapeDtypeStruct((N, fp, Tp), out_dtype)] * n_out,
        grid_spec=pltpu.PrefetchScalarGridSpec(
            num_scalar_prefetch=0,
            grid=(N, n_tiles),
            in_specs=[
                pl.BlockSpec((1, tm, hop), lambda n, t: (n, t, 0)),         # signal rows
                pl.BlockSpec((1, 1, n_halo, hop), lambda n, t: (n, t, 0, 0)),  # halo rows
                pl.BlockSpec((W, cp), lambda n, t: (0, 0)),                 # resident basis
            ],
            out_specs=[pl.BlockSpec((1, fp, tm), lambda n, t: (n, 0, t))] * n_out,
        ),
        compiler_params=pltpu.CompilerParams(
            dimension_semantics=("parallel", "parallel"),
            vmem_limit_bytes=vmem_limit,
        ),
    )(rows, halo, basis)
    return list(outs)


# ----------------------------------------------------------------------------
# FrontEnd module (JAX / Pallas)
# ----------------------------------------------------------------------------
class FrontEndPallas:
    def __init__(self, channel="stereo", n_fft=2048, hop_length=None,
                 win_length=None, window="hann",
                 compute_dtype=jnp.bfloat16, out_dtype=jnp.float32, tm=None):
        self.channel = channel
        self.n_fft = n_fft
        self.hop_length = n_fft // 4 if hop_length is None else hop_length
        self.win_length = n_fft if win_length is None else win_length
        assert self.win_length <= self.n_fft
        self.window_name = window
        self.compute_dtype = compute_dtype
        self.out_dtype = out_dtype
        self.tm = _default_tm() if tm is None else tm
        self._basis_cache = {}

    # ------------------------------ basis ------------------------------
    def _get_basis(self, want_cplx, want_mag):
        key = (bool(want_cplx), bool(want_mag))
        if key in self._basis_cache:
            return self._basis_cache[key]

        W = self.n_fft
        F_full = W // 2 + 1
        even = (W % 2 == 0)
        # Only build the bins a mode actually keeps (torch drops Nyquist for
        # 'cplx' and DC for 'mag' when n_fft is even). Single-mode calls then
        # land F on a multiple of 128 -> no padded MXU columns / wasted stores.
        if even and want_cplx and not want_mag:
            k0, f_used = 0, W // 2
        elif even and want_mag and not want_cplx:
            k0, f_used = 1, W // 2
        else:
            k0, f_used = 0, F_full
        fp = max(_round_up(f_used, 128), 128)

        m = np.arange(self.win_length, dtype=np.float64)
        if self.window_name == "hann":        # periodic, == torch.hann_window
            win = 0.5 * (1.0 - np.cos(2.0 * np.pi * m / self.win_length))
        elif self.window_name == "hamming":   # periodic hamming
            win = 0.54 - 0.46 * np.cos(2.0 * np.pi * m / self.win_length)
        else:
            raise ValueError(self.window_name)
        if self.win_length < W:               # torch center-pads the window to n_fft
            lpad = (W - self.win_length) // 2
            win = np.pad(win, (lpad, W - self.win_length - lpad))

        # Exact integer phase (n*k mod n_fft) before scaling by 2*pi/n_fft:
        # avoids large-angle trig error for big n_fft.  Window folded in.
        n = np.arange(W, dtype=np.int64)
        k = (k0 + np.arange(fp)).astype(np.int64)     # padded bins wrap mod W (sliced off)
        ang = (2.0 * np.pi / W) * np.mod(np.outer(n, k), W).astype(np.float64)
        cos_b = np.cos(ang) * win[:, None]
        nsin_b = -np.sin(ang) * win[:, None]
        basis = jnp.asarray(np.concatenate([cos_b, nsin_b], axis=1),
                            dtype=self.compute_dtype)          # (W, 2*fp)
        self._basis_cache[key] = (basis, k0, f_used, fp)
        return self._basis_cache[key]

    def _pick_tm(self, T, N):
        tm = max(128, min(self.tm, _round_up(max(T, 1), 128)))   # 128-aligned clamp
        # keep >= 2 total grid steps so both TensorCores (v7x megacore) get work
        while tm > 128 and N * ((T + tm - 1) // tm) < 2:
            tm //= 2
        return tm

    # ------------------------------ STFT ------------------------------
    def _stft_all(self, sig, want_cplx, want_mag):
        """sig: (N, L). Returns (requested [re, im, mag] each (N, f_used, T), k0, T)."""
        sig = sig.astype(jnp.float32)
        N, _ = sig.shape
        W, hop = self.n_fft, self.hop_length
        pad = W // 2
        sp = jnp.pad(sig, ((0, 0), (pad, pad)), mode="reflect")   # center=True, reflect
        T = 1 + (sp.shape[1] - W) // hop

        basis, k0, f_used, fp = self._get_basis(want_cplx, want_mag)
        tm = self._pick_tm(T, N)
        Tp = _round_up(T, tm)
        n_tiles = Tp // tm

        if W % hop == 0:
            # In-kernel framing: signal -> hop-sized rows; frame t = rows t..t+n_shift-1.
            n_shift = W // hop
            n_halo = max(n_shift - 1, 1)
            need = (Tp + n_halo) * hop
            if sp.shape[1] < need:
                sp = jnp.pad(sp, ((0, 0), (0, need - sp.shape[1])))
            rows_full = sp[:, :need].reshape(N, Tp + n_halo, hop)
            rows = rows_full[:, :Tp]                                      # (N, Tp, hop)
            halo_idx = ((jnp.arange(n_tiles)[:, None] + 1) * tm
                        + jnp.arange(n_halo)[None, :])                    # (n_tiles, n_halo)
            halo = rows_full[:, halo_idx]                                 # (N, n_tiles, n_halo, hop)
        else:
            # TODO(synk): hop not dividing n_fft -> XLA gather materializes frames.
            n_shift = 1
            idx = jnp.arange(T)[:, None] * hop + jnp.arange(W)[None, :]
            frames = sp[:, idx]                                           # (N, T, W)
            rows = jnp.pad(frames, ((0, 0), (0, Tp - T), (0, 0)))
            halo = jnp.zeros((N, n_tiles, 1, W), jnp.float32)

        outs = _stft_tiles_pallas(rows, halo, basis, n_shift=n_shift, fp=fp,
                                  want_cplx=want_cplx, want_mag=want_mag, tm=tm,
                                  out_dtype=self.out_dtype,
                                  compute_dtype=self.compute_dtype)
        # kernel emits (N, fp, Tp) frequency-major; keep valid bins / frames.
        return [o[:, :f_used, :T] for o in outs], k0, T

    def __call__(self, x, mode):
        want_cplx = "cplx" in mode
        want_mag = "mag" in mode
        if not (want_cplx or want_mag):
            raise NameError("NameError at FrontEnd: check using features for front-end")

        B = x.shape[0]
        L = x.shape[-1]
        if self.channel == "stereo":
            sig = x.reshape(B * 2, L)          # both channels in ONE pallas_call
        else:
            sig = x.reshape(B, L)

        outs, k0, T = self._stft_all(sig, want_cplx, want_mag)
        i = 0
        re = im = mag = None
        if want_cplx:
            re, im = outs[0], outs[1]
            i = 2
        if want_mag:
            mag = outs[i]

        even = (self.n_fft % 2 == 0)
        F_full = self.n_fft // 2 + 1
        drop_frame = (L % round(self.n_fft / 4) == 0)
        t_hi = T - 1 if drop_frame else T

        results = []
        for cur_mode in mode:
            if cur_mode == "cplx":
                lo = 0 - k0
                hi = (self.n_fft // 2 if even else F_full) - k0       # drop Nyquist bin
                if self.channel == "stereo":
                    rl = re[:, lo:hi, :t_hi].reshape(B, 2, hi - lo, t_hi)
                    il = im[:, lo:hi, :t_hi].reshape(B, 2, hi - lo, t_hi)
                    # torch.cat((stft_l, stft_r), -1).permute(0,3,1,2): [re_l, im_l, re_r, im_r]
                    out = jnp.stack([rl[:, 0], il[:, 0], rl[:, 1], il[:, 1]], axis=1)
                else:
                    out = jnp.stack([re[:, lo:hi, :t_hi], im[:, lo:hi, :t_hi]], axis=1)
                results.append(out)
            elif cur_mode == "mag":
                lo = (1 if even else 0) - k0                           # drop DC bin
                hi = F_full - k0
                if self.channel == "stereo":
                    out = mag[:, lo:hi, :t_hi].reshape(B, 2, hi - lo, t_hi)
                else:
                    out = mag[:, lo:hi, :t_hi][:, None]                # (B, 1, F, T)
                results.append(out)
        return jnp.concatenate(results, axis=1) if len(results) > 1 else results[0]


# ----------------------------------------------------------------------------
# Demo
# ----------------------------------------------------------------------------
if __name__ == "__main__":
    key = jax.random.PRNGKey(0)
    # Small, module-consistent shapes: stereo audio (B=2, 2 channels, L=256),
    # n_fft=64 -> hop=16, F=33, T=17 (then last frame & one bin dropped per mode).
    B, L, n_fft = 2, 256, 64
    x = jax.random.normal(key, (B, 2, L), dtype=jnp.float32)

    fe = FrontEndPallas(channel="stereo", n_fft=n_fft)
    out = jax.block_until_ready(fe(x, mode=["cplx", "mag"]))

    F_kept = n_fft // 2          # Nyquist (cplx) / DC (mag) bin dropped -> 32
    T_kept = L // (n_fft // 4)   # last frame dropped -> 16
    assert out.shape == (B, 4 + 2, F_kept, T_kept), out.shape
    assert out.dtype == jnp.float32
    assert bool(jnp.all(jnp.isfinite(out)))

    # mag-only call exercises the trimmed (DC-dropped) basis path; must match the
    # mag channels of the combined call (same bf16 basis columns, same f32 acc).
    out_mag = jax.block_until_ready(fe(x, mode=["mag"]))
    assert out_mag.shape == (B, 2, F_kept, T_kept), out_mag.shape
    mag_scale = float(jnp.max(jnp.abs(out[:, 4:]))) + 1.0
    assert float(jnp.max(jnp.abs(out_mag - out[:, 4:]))) <= 1e-3 * mag_scale

    # Loose numerical check of the left-channel real part against a dense f32
    # DFT reference (kernel uses bf16 MXU inputs with f32 accumulation).
    hop, pad = n_fft // 4, n_fft // 2
    xlp = jnp.pad(x[:, 0], ((0, 0), (pad, pad)), mode="reflect")
    T = 1 + (xlp.shape[-1] - n_fft) // hop
    idx = jnp.arange(T)[:, None] * hop + jnp.arange(n_fft)[None, :]
    nvec = jnp.arange(n_fft, dtype=jnp.float32)
    win = 0.5 * (1.0 - jnp.cos(2.0 * jnp.pi * nvec / n_fft))
    kvec = jnp.arange(n_fft // 2 + 1, dtype=jnp.float32)
    cosb = jnp.cos(2.0 * jnp.pi * nvec[:, None] * kvec[None, :] / n_fft)
    re_ref = jnp.einsum("btw,wf->btf", xlp[:, idx] * win, cosb)      # (B, T, F)
    re_ref = jnp.transpose(re_ref, (0, 2, 1))[:, :-1, :-1]           # drop Nyquist, last frame
    err = float(jnp.max(jnp.abs(out[:, 0] - re_ref)))
    scale = float(jnp.max(jnp.abs(re_ref))) + 1.0
    assert err <= 5e-2 * scale, (err, scale)

    print("KERNEL_OK")
</pallas_src>

<mosaic_0001>
module attributes {stable_mosaic.version = 11 : i64} {
  func.func @_stft_kernel(%arg0: i32, %arg1: i32, %arg2: memref<1x128x16xf32, #tpu.memory_space<vmem>>, %arg3: memref<1x1x3x16xf32, #tpu.memory_space<vmem>>, %arg4: memref<64x256xbf16, #tpu.memory_space<vmem>>, %arg5: memref<1x128x128xf32, #tpu.memory_space<vmem>>, %arg6: memref<1x128x128xf32, #tpu.memory_space<vmem>>, %arg7: memref<1x128x128xf32, #tpu.memory_space<vmem>>) attributes {dimension_semantics = [#tpu.dimension_semantics<parallel>, #tpu.dimension_semantics<parallel>], iteration_bounds = array<i64: 4, 1>, scalar_prefetch = 0 : i64, scratch_operands = 0 : i64, tpu.core_type = #tpu.core_type<tc>, window_params = [{transform_indices = @transform_0, window_bounds = array<i64: 1, 128, 16>}, {transform_indices = @transform_1, window_bounds = array<i64: 1, 1, 3, 16>}, {pipeline_mode = #tpu.pipeline_mode<synchronous>, transform_indices = @transform_2, window_bounds = array<i64: 64, 256>}, {transform_indices = @transform_3, window_bounds = array<i64: 1, 128, 128>}, {transform_indices = @transform_4, window_bounds = array<i64: 1, 128, 128>}, {transform_indices = @transform_5, window_bounds = array<i64: 1, 128, 128>}]} {
    %c0 = arith.constant 0 : index
    %c0_0 = arith.constant 0 : index
    %c0_1 = arith.constant 0 : index
    %0 = vector.load %arg2[%c0, %c0_0, %c0_1] : memref<1x128x16xf32, #tpu.memory_space<vmem>>, vector<1x128x16xf32>
    %1 = vector.shape_cast %0 : vector<1x128x16xf32> to vector<128x16xf32>
    %c0_2 = arith.constant 0 : index
    %c0_3 = arith.constant 0 : index
    %c0_4 = arith.constant 0 : index
    %c0_5 = arith.constant 0 : index
    %2 = vector.load %arg3[%c0_2, %c0_3, %c0_4, %c0_5] : memref<1x1x3x16xf32, #tpu.memory_space<vmem>>, vector<1x1x3x16xf32>
    %3 = vector.shape_cast %2 : vector<1x1x3x16xf32> to vector<3x16xf32>
    %4 = tpu.concatenate %1, %3 in 0 : vector<128x16xf32>, vector<3x16xf32> -> vector<131x16xf32>
    %5 = vector.extract_strided_slice %4 {offsets = [0, 0], sizes = [128, 16], strides = [1, 1]} : vector<131x16xf32> to vector<128x16xf32>
    %6 = arith.truncf %5 : vector<128x16xf32> to vector<128x16xbf16>
    %c0_6 = arith.constant 0 : index
    %c0_7 = arith.constant 0 : index
    %7 = vector.load %arg4[%c0_6, %c0_7] : memref<64x256xbf16, #tpu.memory_space<vmem>>, vector<16x256xbf16>
    %cst = arith.constant dense<0.000000e+00> : vector<128x256xf32>
    %8 = tpu.matmul %6, %7, %cst {dimension_numbers = #tpu.dot_dimension_numbers<[1], [0], [0], [1], [0, 0, 1, 1], [], []>} : vector<128x16xbf16>, vector<16x256xbf16>, vector<128x256xf32> -> vector<128x256xf32>
    %9 = vector.extract_strided_slice %4 {offsets = [1, 0], sizes = [128, 16], strides = [1, 1]} : vector<131x16xf32> to vector<128x16xf32>
    %10 = arith.truncf %9 : vector<128x16xf32> to vector<128x16xbf16>
    %c16 = arith.constant 16 : index
    %c0_8 = arith.constant 0 : index
    %11 = vector.load %arg4[%c16, %c0_8] : memref<64x256xbf16, #tpu.memory_space<vmem>>, vector<16x256xbf16>
    %cst_9 = arith.constant dense<0.000000e+00> : vector<128x256xf32>
    %12 = tpu.matmul %10, %11, %cst_9 {dimension_numbers = #tpu.dot_dimension_numbers<[1], [0], [0], [1], [0, 0, 1, 1], [], []>} : vector<128x16xbf16>, vector<16x256xbf16>, vector<128x256xf32> -> vector<128x256xf32>
    %13 = arith.addf %8, %12 : vector<128x256xf32>
    %14 = vector.extract_strided_slice %4 {offsets = [2, 0], sizes = [128, 16], strides = [1, 1]} : vector<131x16xf32> to vector<128x16xf32>
    %15 = arith.truncf %14 : vector<128x16xf32> to vector<128x16xbf16>
    %c32 = arith.constant 32 : index
    %c0_10 = arith.constant 0 : index
    %16 = vector.load %arg4[%c32, %c0_10] : memref<64x256xbf16, #tpu.memory_space<vmem>>, vector<16x256xbf16>
    %cst_11 = arith.constant dense<0.000000e+00> : vector<128x256xf32>
    %17 = tpu.matmul %15, %16, %cst_11 {dimension_numbers = #tpu.dot_dimension_numbers<[1], [0], [0], [1], [0, 0, 1, 1], [], []>} : vector<128x16xbf16>, vector<16x256xbf16>, vector<128x256xf32> -> vector<128x256xf32>
    %18 = arith.addf %13, %17 : vector<128x256xf32>
    %19 = vector.extract_strided_slice %4 {offsets = [3, 0], sizes = [128, 16], strides = [1, 1]} : vector<131x16xf32> to vector<128x16xf32>
    %20 = arith.truncf %19 : vector<128x16xf32> to vector<128x16xbf16>
    %c48 = arith.constant 48 : index
    %c0_12 = arith.constant 0 : index
    %21 = vector.load %arg4[%c48, %c0_12] : memref<64x256xbf16, #tpu.memory_space<vmem>>, vector<16x256xbf16>
    %cst_13 = arith.constant dense<0.000000e+00> : vector<128x256xf32>
    %22 = tpu.matmul %20, %21, %cst_13 {dimension_numbers = #tpu.dot_dimension_numbers<[1], [0], [0], [1], [0, 0, 1, 1], [], []>} : vector<128x16xbf16>, vector<16x256xbf16>, vector<128x256xf32> -> vector<128x256xf32>
    %23 = arith.addf %18, %22 : vector<128x256xf32>
    %24 = tpu.transpose %23, [1, 0] : vector<128x256xf32> -> vector<256x128xf32>
    %25 = vector.extract_strided_slice %24 {offsets = [0, 0], sizes = [128, 128], strides = [1, 1]} : vector<256x128xf32> to vector<128x128xf32>
    %26 = vector.extract_strided_slice %24 {offsets = [128, 0], sizes = [128, 128], strides = [1, 1]} : vector<256x128xf32> to vector<128x128xf32>
    %c0_14 = arith.constant 0 : index
    %c0_15 = arith.constant 0 : index
    %c0_16 = arith.constant 0 : index
    %27 = vector.load %arg5[%c0_14, %c0_15, %c0_16] : memref<1x128x128xf32, #tpu.memory_space<vmem>>, vector<1x128x128xf32>
    %28 = vector.shape_cast %27 : vector<1x128x128xf32> to vector<128x128xf32>
    %29 = vector.shape_cast %25 : vector<128x128xf32> to vector<1x128x128xf32>
    tpu.vector_store %arg5[%c0_14, %c0_15, %c0_16], %29 {strides = array<i32>} : memref<1x128x128xf32, #tpu.memory_space<vmem>>, vector<1x128x128xf32>,
    %c0_17 = arith.constant 0 : index
    %c0_18 = arith.constant 0 : index
    %c0_19 = arith.constant 0 : index
    %30 = vector.load %arg6[%c0_17, %c0_18, %c0_19] : memref<1x128x128xf32, #tpu.memory_space<vmem>>, vector<1x128x128xf32>
    %31 = vector.shape_cast %30 : vector<1x128x128xf32> to vector<128x128xf32>
    %32 = vector.shape_cast %26 : vector<128x128xf32> to vector<1x128x128xf32>
    tpu.vector_store %arg6[%c0_17, %c0_18, %c0_19], %32 {strides = array<i32>} : memref<1x128x128xf32, #tpu.memory_space<vmem>>, vector<1x128x128xf32>,
    %33 = arith.mulf %25, %25 : vector<128x128xf32>
    %34 = arith.mulf %26, %26 : vector<128x128xf32>
    %35 = arith.addf %33, %34 : vector<128x128xf32>
    %cst_20 = arith.constant 1.000000e-07 : f32
    %36 = vector.broadcast %cst_20 : f32 to vector<128x128xf32>
    %37 = arith.addf %35, %36 : vector<128x128xf32>
    %38 = math.sqrt %37 : vector<128x128xf32>
    %c0_21 = arith.constant 0 : index
    %c0_22 = arith.constant 0 : index
    %c0_23 = arith.constant 0 : index
    %39 = vector.load %arg7[%c0_21, %c0_22, %c0_23] : memref<1x128x128xf32, #tpu.memory_space<vmem>>, vector<1x128x128xf32>
    %40 = vector.shape_cast %39 : vector<1x128x128xf32> to vector<128x128xf32>
    %41 = vector.shape_cast %38 : vector<128x128xf32> to vector<1x128x128xf32>
    tpu.vector_store %arg7[%c0_21, %c0_22, %c0_23], %41 {strides = array<i32>} : memref<1x128x128xf32, #tpu.memory_space<vmem>>, vector<1x128x128xf32>,
    return
  }
  func.func @transform_0(%arg0: i32, %arg1: i32) -> (i32, i32, i32) {
    %c0_i32 = arith.constant 0 : i32
    %c0_i32_0 = arith.constant 0 : i32
    return %arg0, %arg1, %c0_i32 : i32, i32, i32
  }
  func.func @transform_1(%arg0: i32, %arg1: i32) -> (i32, i32, i32, i32) {
    %c0_i32 = arith.constant 0 : i32
    %c0_i32_0 = arith.constant 0 : i32
    %c0_i32_1 = arith.constant 0 : i32
    return %arg0, %arg1, %c0_i32, %c0_i32_0 : i32, i32, i32, i32
  }
  func.func @transform_2(%arg0: i32, %arg1: i32) -> (i32, i32) {
    %c0_i32 = arith.constant 0 : i32
    %c0_i32_0 = arith.constant 0 : i32
    %c0_i32_1 = arith.constant 0 : i32
    return %c0_i32, %c0_i32_0 : i32, i32
  }
  func.func @transform_3(%arg0: i32, %arg1: i32) -> (i32, i32, i32) {
    %c0_i32 = arith.constant 0 : i32
    %c0_i32_0 = arith.constant 0 : i32
    return %arg0, %c0_i32, %arg1 : i32, i32, i32
  }
  func.func @transform_4(%arg0: i32, %arg1: i32) -> (i32, i32, i32) {
    %c0_i32 = arith.constant 0 : i32
    %c0_i32_0 = arith.constant 0 : i32
    return %arg0, %c0_i32, %arg1 : i32, i32, i32
  }
  func.func @transform_5(%arg0: i32, %arg1: i32) -> (i32, i32, i32) {
    %c0_i32 = arith.constant 0 : i32
    %c0_i32_0 = arith.constant 0 : i32
    return %arg0, %c0_i32, %arg1 : i32, i32, i32
  }
}

</mosaic_0001>

<llo_original>
// kernel: tpu_custom_call.1
$region0: #{tpu_custom_call.1}
  #allocation0 [shape = 'u32[]', space=smem, size = 0x4, offset = 0x4, fixed_abs, tag = 'smem constant byte address 0x4 - core index']
  #allocation1 [shape = 'u32[144,128]{1,0:T(1,128)}', space=vmem, size = 0x12000, scoped, tag = 'internal scratch']
  %s0 = inlined_call_operand.vmem [shape: f32[4,128,16], index: 0, kind: input, shape index: {}]
  %s1 = inlined_call_operand.vmem [shape: f32[4,1,3,16], index: 1, kind: input, shape index: {}]
  %s2 = inlined_call_operand.vmem [shape: bf16[64,256], index: 2, kind: input, shape index: {}]
  %s3 = inlined_call_operand.hbm [shape: f32[4,128,128], index: 3, kind: output, shape index: {0}]
  %s4 = inlined_call_operand.hbm [shape: f32[4,128,128], index: 4, kind: output, shape index: {1}]
  %s5 = inlined_call_operand.hbm [shape: f32[4,128,128], index: 5, kind: output, shape index: {2}]
  %6 = xla_tuple %s3, %s4, %s5
  %s7 = sld [smem:[#allocation0]]
  $region61: #{tpu_custom_call.1} parent=0
    _
  %s9 = ssub.s32 1, %s7
  %s10 = scalar_select 0, %s9, %s7
  $region1: #{tpu_custom_call.1} parent=0
    #allocation2 [shape = 'u8[131072]{0}', space=vmem, size = 0x20000, scoped, tag = 'output window, operand 0']
    #allocation3 [shape = 's32[2]{0}', space=sflag, size = 0x8, scoped, tag = 'scoped memory for tpu_custom_call.1']
    #allocation4 [shape = 'u8[131072]{0}', space=vmem, size = 0x20000, scoped, tag = 'output window, operand 1']
    #allocation5 [shape = 's32[2]{0}', space=sflag, size = 0x8, scoped, tag = 'scoped memory for tpu_custom_call.1']
    #allocation6 [shape = 'u8[131072]{0}', space=vmem, size = 0x20000, scoped, tag = 'output window, operand 2']
    %11 = vsyncpa [#allocation3], 0
    %s12 = scalar_lea.sflag [#allocation3], 1
    %13 = vsyncpa %s12, 0
    %14 = vsyncpa [#allocation5], 0
    %s15 = scalar_lea.sflag [#allocation5], 1
    %16 = vsyncpa %s15, 0
    loop: start=0, step=1, limit=6
    $region2: #{tpu_custom_call.1} parent=1 // loop_pre_header
      _
    $region3: #{tpu_custom_call.1} parent=1 // loop_header
      %s18 = sphi 0, %s22
      %p19 = scmp.ge.s32.totalorder %s18, 6
      %s25 = sphi 0, %s37
      %s26 = sphi 0, %s33
      %s27 = sphi 0, %s25
      %s28 = sphi 0, %s26
      %s29 = sphi 0, %s27
      %s30 = sphi 0, %s28
      %s42 = sphi 0, %s44
      %s45 = sphi 0, %s42
      %s46 = sphi 0, %s45
      %s62 = sphi 0, %s46
      %s70 = sphi 0, %s72
      %s73 = sphi 0, %s70
      %s74 = sphi 0, %s73
      %s90 = sphi 0, %s74
      %s94 = sphi 0, %s94
      %s96 = sphi 0, %s94
      %s97 = sphi 0, %s96
      %s111 = sphi 0, %s97
      %s119 = sphi 0, %s121
      %s122 = sphi 0, %s119
      %s123 = sphi 0, %s122
      %s139 = sphi 0, %s123
      %s147 = sphi 0, %s149
      %s150 = sphi 0, %s147
      %s151 = sphi 0, %s150
      %s167 = sphi 0, %s151
      %s175 = sphi 0, %s177
      %s178 = sphi 0, %s175
      %s179 = sphi 0, %s178
      %s195 = sphi 0, %s179
    $region4: #{tpu_custom_call.1} parent=1 // loop_header_branch
      %21 = sbr.rel (%p19) target = $region8
    $region5: #{tpu_custom_call.1} parent=1 // loop_body
      %s23 = ssub.s32 %s18, 1
      %s24 = ssub.s32 %s18, 2
      %s31 = sadd.s32 1, %s26
      %p32 = scmp.ge.s32.totalorder %s31, 1
      %s33 = scalar_select %p32, 0, %s31
      %s34 = sadd.s32 1, %s25
      %s35 = scalar_select %p32, %s34, %s25
      %p36 = scmp.ge.s32.totalorder %s35, 4
      %s37 = scalar_select %p36, 0, %s35
      %s38 = ssub.s32 %s25, %s37
      %s39 = ssub.s32 %s26, %s33
      %s40 = sor.u32 %s38, %s39
      %p41 = scmp.eq.s32.totalorder %s40, 0
      %s43 = sadd.s32 %s42, 1
      %s44 = scalar_select %p41, %s42, %s43
      %p47 = pneg %p41
      %p48 = scmp.eq.s32.totalorder %s18, 3
      %p49 = por %p47, %p48
      %p50 = scmp.ne.s32.totalorder %s42, %s45
      %p51 = scmp.eq.s32.totalorder %s18, 0
      %p52 = por %p50, %p51
      %p53 = scmp.ne.s32.totalorder %s42, %s45
      %p54 = scmp.eq.s32.totalorder %s23, 3
      %p55 = por %p53, %p54
      %p56 = scmp.ne.s32.totalorder %s45, %s46
      %p57 = scmp.eq.s32.totalorder %s23, 0
      %p58 = por %p56, %p57
      %p59 = scmp.ne.s32.totalorder %s45, %s46
      %p60 = scmp.eq.s32.totalorder %s24, 3
      %p61 = por %p59, %p60
      %p63 = scmp.ne.s32.totalorder %s46, %s62
      %p64 = scmp.eq.s32.totalorder %s24, 0
      %p65 = por %p63, %p64
      %s66 = ssub.s32 %s25, %s37
      %s67 = ssub.s32 %s26, %s33
      %s68 = sor.u32 %s66, %s67
      %p69 = scmp.eq.s32.totalorder %s68, 0
      %s71 = sadd.s32 %s70, 1
      %s72 = scalar_select %p69, %s70, %s71
      %p75 = pneg %p69
      %p76 = scmp.eq.s32.totalorder %s18, 3
      %p77 = por %p75, %p76
      %p78 = scmp.ne.s32.totalorder %s70, %s73
      %p79 = scmp.eq.s32.totalorder %s18, 0
      %p80 = por %p78, %p79
      %p81 = scmp.ne.s32.totalorder %s70, %s73
      %p82 = scmp.eq.s32.totalorder %s23, 3
      %p83 = por %p81, %p82
      %p84 = scmp.ne.s32.totalorder %s73, %s74
      %p85 = scmp.eq.s32.totalorder %s23, 0
      %p86 = por %p84, %p85
      %p87 = scmp.ne.s32.totalorder %s73, %s74
      %p88 = scmp.eq.s32.totalorder %s24, 3
      %p89 = por %p87, %p88
      %p91 = scmp.ne.s32.totalorder %s74, %s90
      %p92 = scmp.eq.s32.totalorder %s24, 0
      %p93 = por %p91, %p92
      %s95 = sadd.s32 %s94, 1
      %p98 = scmp.eq.s32.totalorder %s18, 3
      %p99 = scmp.ne.s32.totalorder %s94, %s96
      %p100 = scmp.eq.s32.totalorder %s18, 0
      %p101 = por %p99, %p100
      %p102 = scmp.ne.s32.totalorder %s94, %s96
      %p103 = scmp.eq.s32.totalorder %s23, 3
      %p104 = por %p102, %p103
      %p105 = scmp.ne.s32.totalorder %s96, %s97
      %p106 = scmp.eq.s32.totalorder %s23, 0
      %p107 = por %p105, %p106
      %p108 = scmp.ne.s32.totalorder %s96, %s97
      %p109 = scmp.eq.s32.totalorder %s24, 3
      %p110 = por %p108, %p109
      %p112 = scmp.ne.s32.totalorder %s97, %s111
      %p113 = scmp.eq.s32.totalorder %s24, 0
      %p114 = por %p112, %p113
      %s115 = ssub.s32 %s25, %s37
      %s116 = ssub.s32 %s26, %s33
      %s117 = sor.u32 %s115, %s116
      %p118 = scmp.eq.s32.totalorder %s117, 0
      %s120 = sadd.s32 %s119, 1
      %s121 = scalar_select %p118, %s119, %s120
      %p124 = pneg %p118
      %p125 = scmp.eq.s32.totalorder %s18, 3
      %p126 = por %p124, %p125
      %p127 = scmp.ne.s32.totalorder %s119, %s122
      %p128 = scmp.eq.s32.totalorder %s18, 0
      %p129 = por %p127, %p128
      %p130 = scmp.ne.s32.totalorder %s119, %s122
      %p131 = scmp.eq.s32.totalorder %s23, 3
      %p132 = por %p130, %p131
      %p133 = scmp.ne.s32.totalorder %s122, %s123
      %p134 = scmp.eq.s32.totalorder %s23, 0
      %p135 = por %p133, %p134
      %p136 = scmp.ne.s32.totalorder %s122, %s123
      %p137 = scmp.eq.s32.totalorder %s24, 3
      %p138 = por %p136, %p137
      %p140 = scmp.ne.s32.totalorder %s123, %s139
      %p141 = scmp.eq.s32.totalorder %s24, 0
      %p142 = por %p140, %p141
      %s143 = ssub.s32 %s25, %s37
      %s144 = ssub.s32 %s26, %s33
      %s145 = sor.u32 %s143, %s144
      %p146 = scmp.eq.s32.totalorder %s145, 0
      %s148 = sadd.s32 %s147, 1
      %s149 = scalar_select %p146, %s147, %s148
      %p152 = pneg %p146
      %p153 = scmp.eq.s32.totalorder %s18, 3
      %p154 = por %p152, %p153
      %p155 = scmp.ne.s32.totalorder %s147, %s150
      %p156 = scmp.eq.s32.totalorder %s18, 0
      %p157 = por %p155, %p156
      %p158 = scmp.ne.s32.totalorder %s147, %s150
      %p159 = scmp.eq.s32.totalorder %s23, 3
      %p160 = por %p158, %p159
      %p161 = scmp.ne.s32.totalorder %s150, %s151
      %p162 = scmp.eq.s32.totalorder %s23, 0
      %p163 = por %p161, %p162
      %p164 = scmp.ne.s32.totalorder %s150, %s151
      %p165 = scmp.eq.s32.totalorder %s24, 3
      %p166 = por %p164, %p165
      %p168 = scmp.ne.s32.totalorder %s151, %s167
      %p169 = scmp.eq.s32.totalorder %s24, 0
      %p170 = por %p168, %p169
      %s171 = ssub.s32 %s25, %s37
      %s172 = ssub.s32 %s26, %s33
      %s173 = sor.u32 %s171, %s172
      %p174 = scmp.eq.s32.totalorder %s173, 0
      %s176 = sadd.s32 %s175, 1
      %s177 = scalar_select %p174, %s175, %s176
      %p180 = pneg %p174
      %p181 = scmp.eq.s32.totalorder %s18, 3
      %p182 = por %p180, %p181
      %p183 = scmp.ne.s32.totalorder %s175, %s178
      %p184 = scmp.eq.s32.totalorder %s18, 0
      %p185 = por %p183, %p184
      %p186 = scmp.ne.s32.totalorder %s175, %s178
      %p187 = scmp.eq.s32.totalorder %s23, 3
      %p188 = por %p186, %p187
      %p189 = scmp.ne.s32.totalorder %s178, %s179
      %p190 = scmp.eq.s32.totalorder %s23, 0
      %p191 = por %p189, %p190
      %p192 = scmp.ne.s32.totalorder %s178, %s179
      %p193 = scmp.eq.s32.totalorder %s24, 3
      %p194 = por %p192, %p193
      %p196 = scmp.ne.s32.totalorder %s179, %s195
      %p197 = scmp.eq.s32.totalorder %s24, 0
      %p198 = por %p196, %p197
      %p199 = scmp.le.s32.totalorder 1, %s18
      %p200 = scmp.lt.s32.totalorder %s18, 5
      %p201 = pnand %p199, %p200
      %p202 = pneg %p201
      // Predicated region
      $region9: #{tpu_custom_call.1} parent=5 // pred_check
        _
      $region10: #{tpu_custom_call.1} parent=5 // pred_check_branch
        %204 = sbr.rel (%p201) target = $region12
      $region11: #{tpu_custom_call.1} parent=5 // pred_region
        %s205 = ssub.s32 %s18, 1
        // Predicated region
        $region13: #{tpu_custom_call.1} parent=11 // pred_check
          %p206 = pneg %p107
        $region14: #{tpu_custom_call.1} parent=11 // pred_check_branch
          %208 = sbr.rel (%p206) target = $region16
        $region15: #{tpu_custom_call.1} parent=11 // pred_region
          _
        $region16: #{tpu_custom_call.1} parent=11 // pred_fallthru
          _
      $region12: #{tpu_custom_call.1} parent=5 // pred_fallthru
        _
      %p209 = scmp.lt.s32.totalorder %s18, 4
      // Predicated region
      $region17: #{tpu_custom_call.1} parent=5 // pred_check
        %p210 = pneg %p209
      $region18: #{tpu_custom_call.1} parent=5 // pred_check_branch
        %212 = sbr.rel (%p210) target = $region20
      $region19: #{tpu_custom_call.1} parent=5 // pred_region
        // Predicated region
        $region21: #{tpu_custom_call.1} parent=19 // pred_check
          %p213 = pneg %p52
        $region22: #{tpu_custom_call.1} parent=19 // pred_check_branch
          %215 = sbr.rel (%p213) target = $region24
        $region23: #{tpu_custom_call.1} parent=19 // pred_region
          %s216 = smul.u32 16, %s26
          %p217 = scmp.lt.s32.totalorder %s25, 3
          %s218 = scalar_select %p217, %s25, 3
          %p219 = scmp.lt.s32.totalorder %s216, 15
          %s220 = scalar_select %p219, %s216, 15
          %s221 = smul.addr %s218, 16
          %s222 = sadd.s32 %s220, %s221
          %s223 = smul.addr %s222, 8
          %s224 = scalar_lea.vmem %s0, %s223
          %s225 = smul.u32 16, %s26
        $region24: #{tpu_custom_call.1} parent=19 // pred_fallthru
          _
        // Predicated region
        $region25: #{tpu_custom_call.1} parent=19 // pred_check
          %p226 = pneg %p80
        $region26: #{tpu_custom_call.1} parent=19 // pred_check_branch
          %228 = sbr.rel (%p226) target = $region28
        $region27: #{tpu_custom_call.1} parent=19 // pred_region
          %p229 = scmp.lt.s32.totalorder %s25, 3
          %s230 = scalar_select %p229, %s25, 3
          %p231 = scmp.lt.s32.totalorder %s26, 0
          %s232 = scalar_select %p231, %s26, 0
          %s233 = sadd.s32 %s232, %s230
          %s234 = smul.addr %s233, 4
          %s235 = scalar_lea.vmem %s1, %s234
        $region28: #{tpu_custom_call.1} parent=19 // pred_fallthru
          _
      $region20: #{tpu_custom_call.1} parent=5 // pred_fallthru
        _
      %p236 = scmp.le.s32.totalorder 1, %s18
      %p237 = scmp.lt.s32.totalorder %s18, 5
      %p238 = pnand %p236, %p237
      %p239 = pneg %p238
      // Predicated region
      $region29: #{tpu_custom_call.1} parent=5 // pred_check
        _
      $region30: #{tpu_custom_call.1} parent=5 // pred_check_branch
        %241 = sbr.rel (%p238) target = $region32
      $region31: #{tpu_custom_call.1} parent=5 // pred_region
        %s242 = ssub.s32 %s18, 1
        %s243 = smul.u32 16, %s28
        %p244 = scmp.lt.s32.totalorder %s27, 3
        %s245 = scalar_select %p244, %s27, 3
        %p246 = scmp.lt.s32.totalorder %s243, 15
        %s247 = scalar_select %p246, %s243, 15
        %s248 = smul.addr %s245, 16
        %s249 = sadd.s32 %s247, %s248
        %s250 = smul.addr %s249, 8
        %s251 = scalar_lea.vmem %s0, %s250
        %p252 = pneg %p58
        %p253 = pneg %p55
        %p254 = scmp.lt.s32.totalorder %s27, 3
        %s255 = scalar_select %p254, %s27, 3
        %p256 = scmp.lt.s32.totalorder %s28, 0
        %s257 = scalar_select %p256, %s28, 0
        %s258 = sadd.s32 %s257, %s255
        %s259 = smul.addr %s258, 4
        %s260 = scalar_lea.vmem %s1, %s259
        %p261 = pneg %p86
        %p262 = pneg %p83
        %p263 = pneg %p107
        %p264 = pneg %p104
        %p265 = pneg %p135
        %p266 = pneg %p132
        %s267 = sand.u32 %s122, 1
        %s268 = scalar_lea.sflag [#allocation3], %s267
        %s269 = sand.u32 %s122, 1
        %s270 = smul.addr %s269, 128
        %s271 = scalar_lea.vmem [#allocation2], %s270
        %p272 = pneg %p163
        %p273 = pneg %p160
        %s274 = sand.u32 %s23, 1
        %s275 = scalar_lea.sflag [#allocation5], %s274
        %s276 = sand.u32 %s150, 1
        %s277 = smul.addr %s276, 128
        %s278 = scalar_lea.vmem [#allocation4], %s277
        %p279 = pneg %p191
        %p280 = pneg %p188
        %s281 = sand.u32 %s23, 1
        %s282 = scalar_lea.sflag [#allocation5], %s281
        %s283 = sand.u32 %s178, 1
        %s284 = smul.addr %s283, 128
        %s285 = scalar_lea.vmem [#allocation6], %s284
        %s286 = smul.u32 16, %s28
        %p287 = scmp.lt.s32.totalorder %s27, 3
        %s288 = scalar_select %p287, %s27, 3
        %p289 = scmp.lt.s32.totalorder %s286, 15
        %s290 = scalar_select %p289, %s286, 15
        %s291 = smul.addr %s288, 16
        %s292 = sadd.s32 %s290, %s291
        %s293 = smul.addr %s292, 8
        %s294 = scalar_lea.vmem %s0, %s293
        %s295 = smul.u32 16, %s28
        %p296 = scmp.lt.s32.totalorder %s27, 3
        %s297 = scalar_select %p296, %s27, 3
        %p298 = scmp.lt.s32.totalorder %s28, 0
        %s299 = scalar_select %p298, %s28, 0
        %s300 = sadd.s32 %s299, %s297
        %s301 = smul.addr %s300, 4
        %s302 = scalar_lea.vmem %s1, %s301
        %v304 = vld [vmem:[%s294] sm:$0xff]
        %v305 = vld [vmem:[%s294 + $0x8] sm:$0xff]
        %v306 = vld [vmem:[%s294 + $0x10] sm:$0xff]
        %v307 = vld [vmem:[%s294 + $0x18] sm:$0xff]
        %v308 = vld [vmem:[%s294 + $0x20] sm:$0xff]
        %v309 = vld [vmem:[%s294 + $0x28] sm:$0xff]
        %v310 = vld [vmem:[%s294 + $0x30] sm:$0xff]
        %v311 = vld [vmem:[%s294 + $0x38] sm:$0xff]
        %v312 = vld [vmem:[%s294 + $0x40] sm:$0xff]
        %v313 = vld [vmem:[%s294 + $0x48] sm:$0xff]
        %v314 = vld [vmem:[%s294 + $0x50] sm:$0xff]
        %v315 = vld [vmem:[%s294 + $0x58] sm:$0xff]
        %v316 = vld [vmem:[%s294 + $0x60] sm:$0xff]
        %v317 = vld [vmem:[%s294 + $0x68] sm:$0xff]
        %v318 = vld [vmem:[%s294 + $0x70] sm:$0xff]
        %v319 = vld [vmem:[%s294 + $0x78] sm:$0xff]
        %v320 = vld [vmem:[%s302] sm:$0x7]
        %v321 = vpack.c.bf16 %v305, %v304
        %v322 = vpack.c.bf16 %v307, %v306
        %v323 = vpack.c.bf16 %v309, %v308
        %v324 = vpack.c.bf16 %v311, %v310
        %v325 = vpack.c.bf16 %v313, %v312
        %v326 = vpack.c.bf16 %v315, %v314
        %v327 = vpack.c.bf16 %v317, %v316
        %v328 = vpack.c.bf16 %v319, %v318
        %v329 = vld [vmem:[%s2] sm:$0xff]
        %v330 = vld [vmem:[%s2 + $0x8] sm:$0xff]
        %v331 = vpack.c.bf16 %v320, %v320
        %v332 = vld [vmem:[%s2 + $0x10] sm:$0xff]
        %v333 = vld [vmem:[%s2 + $0x18] sm:$0xff]
        %vm334 = vsmask.f32 7424
        %v336 = vshrl.u32 %v321, 16
        %v338 = vshll.u32 %v321, 16
        %v340 = vrot.slane %v338, 1
        %v341 = vor.u32 %v336, %v340
        %v343 = vshll.u32 %v322, 16
        %v345 = vrot.slane %v343, 1
        %v346 = vsel %vm334, %v341, %v345
        %v347 = vshrl.u32 %v322, 16
        %v349 = vor.u32 %v347, %v345
        %v351 = vshll.u32 %v323, 16
        %v353 = vrot.slane %v351, 1
        %v354 = vsel %vm334, %v349, %v353
        %v355 = vshrl.u32 %v323, 16
        %v357 = vor.u32 %v355, %v353
        %v359 = vshll.u32 %v324, 16
        %v361 = vrot.slane %v359, 1
        %v362 = vsel %vm334, %v357, %v361
        %v363 = vshrl.u32 %v324, 16
        %v365 = vor.u32 %v363, %v361
        %v367 = vshll.u32 %v325, 16
        %v369 = vrot.slane %v367, 1
        %v370 = vsel %vm334, %v365, %v369
        %v371 = vshrl.u32 %v325, 16
        %v373 = vor.u32 %v371, %v369
        %v375 = vshll.u32 %v326, 16
        %v377 = vrot.slane %v375, 1
        %v378 = vsel %vm334, %v373, %v377
        %v379 = vshrl.u32 %v326, 16
        %v381 = vor.u32 %v379, %v377
        %v383 = vshll.u32 %v327, 16
        %v385 = vrot.slane %v383, 1
        %v386 = vsel %vm334, %v381, %v385
        %v387 = vshrl.u32 %v327, 16
        %v389 = vor.u32 %v387, %v385
        %v391 = vshll.u32 %v328, 16
        %v393 = vrot.slane %v391, 1
        %v394 = vsel %vm334, %v389, %v393
        %v395 = vshrl.u32 %v328, 16
        %v397 = vor.u32 %v395, %v393
        %v399 = vshll.u32 %v331, 16
        %v401 = vrot.slane %v399, 1
        %v402 = vsel %vm334, %v397, %v401
        %v405 = vunpack.c.l.b16 %v332
        %v406 = vunpack.c.h.b16 %v332
        %v407 = vunpack.c.l.b16 %v333
        %v408 = vunpack.c.h.b16 %v333
        %v409 = vpack.c.b16 %v407, %v405
        %v410 = vpack.c.b16 %v408, %v406
        %vm413 = vcmask 130048
        %v415 = vsel %vm413, %v346, 0
        %v418 = vsel %vm413, %v354, 0
        %v421 = vsel %vm413, %v362, 0
        %v424 = vsel %vm413, %v370, 0
        %v427 = vsel %vm413, %v378, 0
        %v430 = vsel %vm413, %v386, 0
        %v433 = vsel %vm413, %v394, 0
        %v436 = vsel %vm413, %v402, 0
        %438 = vmatprep.subr.bf16.mxu0 0
        %439 = vmatpush1.bf16.msra.mxu0 0
        %440 = vmatprep.subr.bf16.mxu0 0
        %441 = vmatpush1.bf16.msra.mxu0 0
        %442 = vmatprep.subr.bf16.mxu0 0
        %443 = vmatpush1.bf16.msra.mxu0 0
        %444 = vmatprep.subr.bf16.mxu0 0
        %445 = vmatpush1.bf16.msra.mxu0 0
        %446 = vmatprep.subr.bf16.mxu0 0
        %447 = vmatpush1.bf16.msra.mxu0 0
        %448 = vmatprep.subr.bf16.mxu0 0
        %449 = vmatpush1.bf16.msra.mxu0 0
        %450 = vmatprep.subr.bf16.mxu0 0
        %451 = vmatpush1.bf16.msra.mxu0 0
        %452 = vmatprep.subr.bf16.mxu0 %v410
        %453 = vmatpush1.bf16.msra.mxu0 %v409
        %454 = vmatprep.subr.bf16.mxu0 0
        %455 = vmatpush2.bf16.msra.mxu0 0
        %456 = vmatprep.subr.bf16.mxu0 0
        %457 = vmatpush2.bf16.msra.mxu0 0
        %458 = vmatprep.subr.bf16.mxu0 0
        %459 = vmatpush2.bf16.msra.mxu0 0
        %460 = vmatprep.subr.bf16.mxu0 0
        %461 = vmatpush2.bf16.msra.mxu0 0
        %462 = vmatprep.subr.bf16.mxu0 0
        %463 = vmatpush2.bf16.msra.mxu0 0
        %464 = vmatprep.subr.bf16.mxu0 0
        %465 = vmatpush2.bf16.msra.mxu0 0
        %466 = vmatprep.subr.bf16.mxu0 0
        %467 = vmatpush2.bf16.msra.mxu0 0
        %468 = vmatprep.subr.bf16.mxu0 0
        %469 = vmatpush2.bf16.msra.mxu0 0
        %470 = vmatprep.mubr.bf16.mxu0 0
        %471 = vmatmul.mubr.bf16.gmra.mxu0 %v415
        %v472 = vpop.f32.mrf.mxu0
        %v473 = vadd.f32 0.0, %v472
        %v474 = vpop.f32.mrf.mxu0
        %v475 = vadd.f32 0.0, %v474
        %v476 = vpop.f32.mrf.mxu0
        %v477 = vadd.f32 0.0, %v476
        %v478 = vpop.f32.mrf.mxu0
        %v479 = vadd.f32 0.0, %v478
        %480 = vmatprep.mubr.bf16.mxu0 0
        %481 = vmatmul.mubr.bf16.gmra.mxu0 %v418
        %v482 = vpop.f32.mrf.mxu0
        %v483 = vadd.f32 0.0, %v482
        %v484 = vpop.f32.mrf.mxu0
        %v485 = vadd.f32 0.0, %v484
        %v486 = vpop.f32.mrf.mxu0
        %v487 = vadd.f32 0.0, %v486
        %v488 = vpop.f32.mrf.mxu0
        %v489 = vadd.f32 0.0, %v488
        %490 = vmatprep.mubr.bf16.mxu0 0
        %491 = vmatmul.mubr.bf16.gmra.mxu0 %v421
        %v492 = vpop.f32.mrf.mxu0
        %v493 = vadd.f32 0.0, %v492
        %v494 = vpop.f32.mrf.mxu0
        %v495 = vadd.f32 0.0, %v494
        %v496 = vpop.f32.mrf.mxu0
        %v497 = vadd.f32 0.0, %v496
        %v498 = vpop.f32.mrf.mxu0
        %v499 = vadd.f32 0.0, %v498
        %500 = vmatprep.mubr.bf16.mxu0 0
        %501 = vmatmul.mubr.bf16.gmra.mxu0 %v424
        %v502 = vpop.f32.mrf.mxu0
        %v503 = vadd.f32 0.0, %v502
        %v504 = vpop.f32.mrf.mxu0
        %v505 = vadd.f32 0.0, %v504
        %v506 = vpop.f32.mrf.mxu0
        %v507 = vadd.f32 0.0, %v506
        %v508 = vpop.f32.mrf.mxu0
        %v509 = vadd.f32 0.0, %v508
        %510 = vmatprep.mubr.bf16.mxu0 0
        %511 = vmatmul.mubr.bf16.gmra.mxu0 %v427
        %v512 = vpop.f32.mrf.mxu0
        %v513 = vadd.f32 0.0, %v512
        %v514 = vpop.f32.mrf.mxu0
        %v515 = vadd.f32 0.0, %v514
        %v516 = vpop.f32.mrf.mxu0
        %v517 = vadd.f32 0.0, %v516
        %v518 = vpop.f32.mrf.mxu0
        %v519 = vadd.f32 0.0, %v518
        %520 = vmatprep.mubr.bf16.mxu0 0
        %521 = vmatmul.mubr.bf16.gmra.mxu0 %v430
        %v522 = vpop.f32.mrf.mxu0
        %v523 = vadd.f32 0.0, %v522
        %v524 = vpop.f32.mrf.mxu0
        %v525 = vadd.f32 0.0, %v524
        %v526 = vpop.f32.mrf.mxu0
        %v527 = vadd.f32 0.0, %v526
        %v528 = vpop.f32.mrf.mxu0
        %v529 = vadd.f32 0.0, %v528
        %530 = vmatprep.mubr.bf16.mxu0 0
        %531 = vmatmul.mubr.bf16.gmra.mxu0 %v433
        %v532 = vpop.f32.mrf.mxu0
        %v533 = vadd.f32 0.0, %v532
        %v534 = vpop.f32.mrf.mxu0
        %v535 = vadd.f32 0.0, %v534
        %v536 = vpop.f32.mrf.mxu0
        %v537 = vadd.f32 0.0, %v536
        %v538 = vpop.f32.mrf.mxu0
        %v539 = vadd.f32 0.0, %v538
        %540 = vmatprep.mubr.bf16.mxu0 0
        %541 = vmatmul.mubr.bf16.gmra.mxu0 %v436
        %v542 = vpop.f32.mrf.mxu0
        %v543 = vadd.f32 0.0, %v542
        %v544 = vpop.f32.mrf.mxu0
        %v545 = vadd.f32 0.0, %v544
        %v546 = vpop.f32.mrf.mxu0
        %v547 = vadd.f32 0.0, %v546
        %v548 = vpop.f32.mrf.mxu0
        %v549 = vadd.f32 0.0, %v548
        %550 = vdwg.mxu0
        %v553 = vunpack.c.l.b16 %v329
        %v554 = vunpack.c.h.b16 %v329
        %v555 = vunpack.c.l.b16 %v330
        %v556 = vunpack.c.h.b16 %v330
        %v557 = vpack.c.b16 %v555, %v553
        %v558 = vpack.c.b16 %v556, %v554
        %v561 = vsel %vm413, %v321, 0
        %v563 = vsel %vm413, %v322, 0
        %v565 = vsel %vm413, %v323, 0
        %v567 = vsel %vm413, %v324, 0
        %v569 = vsel %vm413, %v325, 0
        %v571 = vsel %vm413, %v326, 0
        %v573 = vsel %vm413, %v327, 0
        %v575 = vsel %vm413, %v328, 0
        %577 = vmatprep.subr.bf16.mxu0 0
        %578 = vmatpush1.bf16.msra.mxu0 0
        %579 = vmatprep.subr.bf16.mxu0 0
        %580 = vmatpush1.bf16.msra.mxu0 0
        %581 = vmatprep.subr.bf16.mxu0 0
        %582 = vmatpush1.bf16.msra.mxu0 0
        %583 = vmatprep.subr.bf16.mxu0 0
        %584 = vmatpush1.bf16.msra.mxu0 0
        %585 = vmatprep.subr.bf16.mxu0 0
        %586 = vmatpush1.bf16.msra.mxu0 0
        %587 = vmatprep.subr.bf16.mxu0 0
        %588 = vmatpush1.bf16.msra.mxu0 0
        %589 = vmatprep.subr.bf16.mxu0 0
        %590 = vmatpush1.bf16.msra.mxu0 0
        %591 = vmatprep.subr.bf16.mxu0 %v558
        %592 = vmatpush1.bf16.msra.mxu0 %v557
        %593 = vmatprep.subr.bf16.mxu0 0
        %594 = vmatpush2.bf16.msra.mxu0 0
        %595 = vmatprep.subr.bf16.mxu0 0
        %596 = vmatpush2.bf16.msra.mxu0 0
        %597 = vmatprep.subr.bf16.mxu0 0
        %598 = vmatpush2.bf16.msra.mxu0 0
        %599 = vmatprep.subr.bf16.mxu0 0
        %600 = vmatpush2.bf16.msra.mxu0 0
        %601 = vmatprep.subr.bf16.mxu0 0
        %602 = vmatpush2.bf16.msra.mxu0 0
        %603 = vmatprep.subr.bf16.mxu0 0
        %604 = vmatpush2.bf16.msra.mxu0 0
        %605 = vmatprep.subr.bf16.mxu0 0
        %606 = vmatpush2.bf16.msra.mxu0 0
        %607 = vmatprep.subr.bf16.mxu0 0
        %608 = vmatpush2.bf16.msra.mxu0 0
        %609 = vmatprep.mubr.bf16.mxu0 0
        %610 = vmatmul.mubr.bf16.gmra.mxu0 %v561
        %v611 = vpop.f32.mrf.mxu0
        %v612 = vadd.f32 %v473, %v611
        %v613 = vpop.f32.mrf.mxu0
        %v614 = vadd.f32 %v475, %v613
        %v615 = vpop.f32.mrf.mxu0
        %v616 = vadd.f32 %v477, %v615
        %v617 = vpop.f32.mrf.mxu0
        %v618 = vadd.f32 %v479, %v617
        %619 = vmatprep.mubr.bf16.mxu0 0
        %620 = vmatmul.mubr.bf16.gmra.mxu0 %v563
        %v621 = vpop.f32.mrf.mxu0
        %v622 = vadd.f32 %v483, %v621
        %v623 = vpop.f32.mrf.mxu0
        %v624 = vadd.f32 %v485, %v623
        %v625 = vpop.f32.mrf.mxu0
        %v626 = vadd.f32 %v487, %v625
        %v627 = vpop.f32.mrf.mxu0
        %v628 = vadd.f32 %v489, %v627
        %629 = vmatprep.mubr.bf16.mxu0 0
        %630 = vmatmul.mubr.bf16.gmra.mxu0 %v565
        %v631 = vpop.f32.mrf.mxu0
        %v632 = vadd.f32 %v493, %v631
        %v633 = vpop.f32.mrf.mxu0
        %v634 = vadd.f32 %v495, %v633
        %v635 = vpop.f32.mrf.mxu0
        %v636 = vadd.f32 %v497, %v635
        %v637 = vpop.f32.mrf.mxu0
        %v638 = vadd.f32 %v499, %v637
        %639 = vmatprep.mubr.bf16.mxu0 0
        %640 = vmatmul.mubr.bf16.gmra.mxu0 %v567
        %v641 = vpop.f32.mrf.mxu0
        %v642 = vadd.f32 %v503, %v641
        %v643 = vpop.f32.mrf.mxu0
        %v644 = vadd.f32 %v505, %v643
        %v645 = vpop.f32.mrf.mxu0
        %v646 = vadd.f32 %v507, %v645
        %v647 = vpop.f32.mrf.mxu0
        %v648 = vadd.f32 %v509, %v647
        %649 = vmatprep.mubr.bf16.mxu0 0
        %650 = vmatmul.mubr.bf16.gmra.mxu0 %v569
        %v651 = vpop.f32.mrf.mxu0
        %v652 = vadd.f32 %v513, %v651
        %v653 = vpop.f32.mrf.mxu0
        %v654 = vadd.f32 %v515, %v653
        %v655 = vpop.f32.mrf.mxu0
        %v656 = vadd.f32 %v517, %v655
        %v657 = vpop.f32.mrf.mxu0
        %v658 = vadd.f32 %v519, %v657
        %659 = vmatprep.mubr.bf16.mxu0 0
        %660 = vmatmul.mubr.bf16.gmra.mxu0 %v571
        %v661 = vpop.f32.mrf.mxu0
        %v662 = vadd.f32 %v523, %v661
        %v663 = vpop.f32.mrf.mxu0
        %v664 = vadd.f32 %v525, %v663
        %v665 = vpop.f32.mrf.mxu0
        %v666 = vadd.f32 %v527, %v665
        %v667 = vpop.f32.mrf.mxu0
        %v668 = vadd.f32 %v529, %v667
        %669 = vmatprep.mubr.bf16.mxu0 0
        %670 = vmatmul.mubr.bf16.gmra.mxu0 %v573
        %v671 = vpop.f32.mrf.mxu0
        %v672 = vadd.f32 %v533, %v671
        %v673 = vpop.f32.mrf.mxu0
        %v674 = vadd.f32 %v535, %v673
        %v675 = vpop.f32.mrf.mxu0
        %v676 = vadd.f32 %v537, %v675
        %v677 = vpop.f32.mrf.mxu0
        %v678 = vadd.f32 %v539, %v677
        %679 = vmatprep.mubr.bf16.mxu0 0
        %680 = vmatmul.mubr.bf16.gmra.mxu0 %v575
        %v681 = vpop.f32.mrf.mxu0
        %v682 = vadd.f32 %v543, %v681
        %v683 = vpop.f32.mrf.mxu0
        %v684 = vadd.f32 %v545, %v683
        %v685 = vpop.f32.mrf.mxu0
        %v686 = vadd.f32 %v547, %v685
        %v687 = vpop.f32.mrf.mxu0
        %v688 = vadd.f32 %v549, %v687
        %689 = vdwg.mxu0
        %v690 = vld [vmem:[%s2 + $0x20] sm:$0xff]
        %v691 = vld [vmem:[%s2 + $0x28] sm:$0xff]
        %vm701 = vcmask 1046528
        %v702 = vrot.slane %v321, 1
        %v703 = vrot.slane %v322, 1
        %v704 = vsel %vm701, %v702, %v703
        %v705 = vrot.slane %v323, 1
        %v706 = vsel %vm701, %v703, %v705
        %v707 = vrot.slane %v324, 1
        %v708 = vsel %vm701, %v705, %v707
        %v709 = vrot.slane %v325, 1
        %v710 = vsel %vm701, %v707, %v709
        %v711 = vrot.slane %v326, 1
        %v712 = vsel %vm701, %v709, %v711
        %v713 = vrot.slane %v327, 1
        %v714 = vsel %vm701, %v711, %v713
        %v715 = vrot.slane %v328, 1
        %v716 = vsel %vm701, %v713, %v715
        %v717 = vrot.slane %v331, 1
        %v718 = vsel %vm701, %v715, %v717
        %v721 = vunpack.c.l.b16 %v690
        %v722 = vunpack.c.h.b16 %v690
        %v723 = vunpack.c.l.b16 %v691
        %v724 = vunpack.c.h.b16 %v691
        %v725 = vpack.c.b16 %v723, %v721
        %v726 = vpack.c.b16 %v724, %v722
        %v730 = vsel %vm413, %v704, 0
        %v733 = vsel %vm413, %v706, 0
        %v736 = vsel %vm413, %v708, 0
        %v739 = vsel %vm413, %v710, 0
        %v742 = vsel %vm413, %v712, 0
        %v745 = vsel %vm413, %v714, 0
        %v748 = vsel %vm413, %v716, 0
        %v751 = vsel %vm413, %v718, 0
        %753 = vmatprep.subr.bf16.mxu0 0
        %754 = vmatpush1.bf16.msra.mxu0 0
        %755 = vmatprep.subr.bf16.mxu0 0
        %756 = vmatpush1.bf16.msra.mxu0 0
        %757 = vmatprep.subr.bf16.mxu0 0
        %758 = vmatpush1.bf16.msra.mxu0 0
        %759 = vmatprep.subr.bf16.mxu0 0
        %760 = vmatpush1.bf16.msra.mxu0 0
        %761 = vmatprep.subr.bf16.mxu0 0
        %762 = vmatpush1.bf16.msra.mxu0 0
        %763 = vmatprep.subr.bf16.mxu0 0
        %764 = vmatpush1.bf16.msra.mxu0 0
        %765 = vmatprep.subr.bf16.mxu0 0
        %766 = vmatpush1.bf16.msra.mxu0 0
        %767 = vmatprep.subr.bf16.mxu0 %v726
        %768 = vmatpush1.bf16.msra.mxu0 %v725
        %769 = vmatprep.subr.bf16.mxu0 0
        %770 = vmatpush2.bf16.msra.mxu0 0
        %771 = vmatprep.subr.bf16.mxu0 0
        %772 = vmatpush2.bf16.msra.mxu0 0
        %773 = vmatprep.subr.bf16.mxu0 0
        %774 = vmatpush2.bf16.msra.mxu0 0
        %775 = vmatprep.subr.bf16.mxu0 0
        %776 = vmatpush2.bf16.msra.mxu0 0
        %777 = vmatprep.subr.bf16.mxu0 0
        %778 = vmatpush2.bf16.msra.mxu0 0
        %779 = vmatprep.subr.bf16.mxu0 0
        %780 = vmatpush2.bf16.msra.mxu0 0
        %781 = vmatprep.subr.bf16.mxu0 0
        %782 = vmatpush2.bf16.msra.mxu0 0
        %783 = vmatprep.subr.bf16.mxu0 0
        %784 = vmatpush2.bf16.msra.mxu0 0
        %785 = vmatprep.mubr.bf16.mxu0 0
        %786 = vmatmul.mubr.bf16.gmra.mxu0 %v730
        %v787 = vpop.f32.mrf.mxu0
        %v788 = vadd.f32 0.0, %v787
        %v789 = vpop.f32.mrf.mxu0
        %v790 = vadd.f32 0.0, %v789
        %v791 = vpop.f32.mrf.mxu0
        %v792 = vadd.f32 0.0, %v791
        %v793 = vpop.f32.mrf.mxu0
        %v794 = vadd.f32 0.0, %v793
        %795 = vmatprep.mubr.bf16.mxu0 0
        %796 = vmatmul.mubr.bf16.gmra.mxu0 %v733
        %v797 = vpop.f32.mrf.mxu0
        %v798 = vadd.f32 0.0, %v797
        %v799 = vpop.f32.mrf.mxu0
        %v800 = vadd.f32 0.0, %v799
        %v801 = vpop.f32.mrf.mxu0
        %v802 = vadd.f32 0.0, %v801
        %v803 = vpop.f32.mrf.mxu0
        %v804 = vadd.f32 0.0, %v803
        %805 = vmatprep.mubr.bf16.mxu0 0
        %806 = vmatmul.mubr.bf16.gmra.mxu0 %v736
        %v807 = vpop.f32.mrf.mxu0
        %v808 = vadd.f32 0.0, %v807
        %v809 = vpop.f32.mrf.mxu0
        %v810 = vadd.f32 0.0, %v809
        %v811 = vpop.f32.mrf.mxu0
        %v812 = vadd.f32 0.0, %v811
        %v813 = vpop.f32.mrf.mxu0
        %v814 = vadd.f32 0.0, %v813
        %815 = vmatprep.mubr.bf16.mxu0 0
        %816 = vmatmul.mubr.bf16.gmra.mxu0 %v739
        %v817 = vpop.f32.mrf.mxu0
        %v818 = vadd.f32 0.0, %v817
        %v819 = vpop.f32.mrf.mxu0
        %v820 = vadd.f32 0.0, %v819
        %v821 = vpop.f32.mrf.mxu0
        %v822 = vadd.f32 0.0, %v821
        %v823 = vpop.f32.mrf.mxu0
        %v824 = vadd.f32 0.0, %v823
        %825 = vmatprep.mubr.bf16.mxu0 0
        %826 = vmatmul.mubr.bf16.gmra.mxu0 %v742
        %v827 = vpop.f32.mrf.mxu0
        %v828 = vadd.f32 0.0, %v827
        %v829 = vpop.f32.mrf.mxu0
        %v830 = vadd.f32 0.0, %v829
        %v831 = vpop.f32.mrf.mxu0
        %v832 = vadd.f32 0.0, %v831
        %v833 = vpop.f32.mrf.mxu0
        %v834 = vadd.f32 0.0, %v833
        %835 = vmatprep.mubr.bf16.mxu0 0
        %836 = vmatmul.mubr.bf16.gmra.mxu0 %v745
        %v837 = vpop.f32.mrf.mxu0
        %v838 = vadd.f32 0.0, %v837
        %v839 = vpop.f32.mrf.mxu0
        %v840 = vadd.f32 0.0, %v839
        %v841 = vpop.f32.mrf.mxu0
        %v842 = vadd.f32 0.0, %v841
        %v843 = vpop.f32.mrf.mxu0
        %v844 = vadd.f32 0.0, %v843
        %845 = vmatprep.mubr.bf16.mxu0 0
        %846 = vmatmul.mubr.bf16.gmra.mxu0 %v748
        %v847 = vpop.f32.mrf.mxu0
        %v848 = vadd.f32 0.0, %v847
        %v849 = vpop.f32.mrf.mxu0
        %v850 = vadd.f32 0.0, %v849
        %v851 = vpop.f32.mrf.mxu0
        %v852 = vadd.f32 0.0, %v851
        %v853 = vpop.f32.mrf.mxu0
        %v854 = vadd.f32 0.0, %v853
        %855 = vmatprep.mubr.bf16.mxu0 0
        %856 = vmatmul.mubr.bf16.gmra.mxu0 %v751
        %v857 = vpop.f32.mrf.mxu0
        %v858 = vadd.f32 0.0, %v857
        %v859 = vpop.f32.mrf.mxu0
        %v860 = vadd.f32 0.0, %v859
        %v861 = vpop.f32.mrf.mxu0
        %v862 = vadd.f32 0.0, %v861
        %v863 = vpop.f32.mrf.mxu0
        %v864 = vadd.f32 0.0, %v863
        %865 = vdwg.mxu0
        %v866 = vadd.f32 %v612, %v788
        %v867 = vadd.f32 %v614, %v790
        %v868 = vadd.f32 %v616, %v792
        %v869 = vadd.f32 %v618, %v794
        %v870 = vadd.f32 %v622, %v798
        %v871 = vadd.f32 %v624, %v800
        %v872 = vadd.f32 %v626, %v802
        %v873 = vadd.f32 %v628, %v804
        %v874 = vadd.f32 %v632, %v808
        %v875 = vadd.f32 %v634, %v810
        %v876 = vadd.f32 %v636, %v812
        %v877 = vadd.f32 %v638, %v814
        %v878 = vadd.f32 %v642, %v818
        %v879 = vadd.f32 %v644, %v820
        %v880 = vadd.f32 %v646, %v822
        %v881 = vadd.f32 %v648, %v824
        %v882 = vadd.f32 %v652, %v828
        %v883 = vadd.f32 %v654, %v830
        %v884 = vadd.f32 %v656, %v832
        %v885 = vadd.f32 %v658, %v834
        %v886 = vadd.f32 %v662, %v838
        %v887 = vadd.f32 %v664, %v840
        %v888 = vadd.f32 %v666, %v842
        %v889 = vadd.f32 %v668, %v844
        %v890 = vadd.f32 %v672, %v848
        %v891 = vadd.f32 %v674, %v850
        %v892 = vadd.f32 %v676, %v852
        %v893 = vadd.f32 %v678, %v854
        %v894 = vadd.f32 %v682, %v858
        %v895 = vadd.f32 %v684, %v860
        %v896 = vadd.f32 %v686, %v862
        %v897 = vadd.f32 %v688, %v864
        %v898 = vld [vmem:[%s2 + $0x30] sm:$0xff]
        %v899 = vld [vmem:[%s2 + $0x38] sm:$0xff]
        %vm900 = vsmask.f32 6400
        %v901 = vrot.slane %v336, 1
        %v902 = vrot.slane %v338, 2
        %v903 = vor.u32 %v901, %v902
        %v904 = vrot.slane %v347, 1
        %v905 = vrot.slane %v343, 2
        %v906 = vor.u32 %v904, %v905
        %v907 = vsel %vm900, %v903, %v906
        %v908 = vrot.slane %v355, 1
        %v909 = vrot.slane %v351, 2
        %v910 = vor.u32 %v908, %v909
        %v911 = vsel %vm900, %v906, %v910
        %v912 = vrot.slane %v363, 1
        %v913 = vrot.slane %v359, 2
        %v914 = vor.u32 %v912, %v913
        %v915 = vsel %vm900, %v910, %v914
        %v916 = vrot.slane %v371, 1
        %v917 = vrot.slane %v367, 2
        %v918 = vor.u32 %v916, %v917
        %v919 = vsel %vm900, %v914, %v918
        %v920 = vrot.slane %v379, 1
        %v921 = vrot.slane %v375, 2
        %v922 = vor.u32 %v920, %v921
        %v923 = vsel %vm900, %v918, %v922
        %v924 = vrot.slane %v387, 1
        %v925 = vrot.slane %v383, 2
        %v926 = vor.u32 %v924, %v925
        %v927 = vsel %vm900, %v922, %v926
        %v928 = vrot.slane %v395, 1
        %v929 = vrot.slane %v391, 2
        %v930 = vor.u32 %v928, %v929
        %v931 = vsel %vm900, %v926, %v930
        %v932 = vshrl.u32 %v331, 16
        %v934 = vrot.slane %v932, 1
        %v935 = vrot.slane %v399, 2
        %v936 = vor.u32 %v934, %v935
        %v937 = vsel %vm900, %v930, %v936
        %v940 = vunpack.c.l.b16 %v898
        %v941 = vunpack.c.h.b16 %v898
        %v942 = vunpack.c.l.b16 %v899
        %v943 = vunpack.c.h.b16 %v899
        %v944 = vpack.c.b16 %v942, %v940
        %v945 = vpack.c.b16 %v943, %v941
        %v949 = vsel %vm413, %v907, 0
        %v952 = vsel %vm413, %v911, 0
        %v955 = vsel %vm413, %v915, 0
        %v958 = vsel %vm413, %v919, 0
        %v961 = vsel %vm413, %v923, 0
        %v964 = vsel %vm413, %v927, 0
        %v967 = vsel %vm413, %v931, 0
        %v970 = vsel %vm413, %v937, 0
        %972 = vmatprep.subr.bf16.mxu0 0
        %973 = vmatpush1.bf16.msra.mxu0 0
        %974 = vmatprep.subr.bf16.mxu0 0
        %975 = vmatpush1.bf16.msra.mxu0 0
        %976 = vmatprep.subr.bf16.mxu0 0
        %977 = vmatpush1.bf16.msra.mxu0 0
        %978 = vmatprep.subr.bf16.mxu0 0
        %979 = vmatpush1.bf16.msra.mxu0 0
        %980 = vmatprep.subr.bf16.mxu0 0
        %981 = vmatpush1.bf16.msra.mxu0 0
        %982 = vmatprep.subr.bf16.mxu0 0
        %983 = vmatpush1.bf16.msra.mxu0 0
        %984 = vmatprep.subr.bf16.mxu0 0
        %985 = vmatpush1.bf16.msra.mxu0 0
        %986 = vmatprep.subr.bf16.mxu0 %v945
        %987 = vmatpush1.bf16.msra.mxu0 %v944
        %988 = vmatprep.subr.bf16.mxu0 0
        %989 = vmatpush2.bf16.msra.mxu0 0
        %990 = vmatprep.subr.bf16.mxu0 0
        %991 = vmatpush2.bf16.msra.mxu0 0
        %992 = vmatprep.subr.bf16.mxu0 0
        %993 = vmatpush2.bf16.msra.mxu0 0
        %994 = vmatprep.subr.bf16.mxu0 0
        %995 = vmatpush2.bf16.msra.mxu0 0
        %996 = vmatprep.subr.bf16.mxu0 0
        %997 = vmatpush2.bf16.msra.mxu0 0
        %998 = vmatprep.subr.bf16.mxu0 0
        %999 = vmatpush2.bf16.msra.mxu0 0
        %1000 = vmatprep.subr.bf16.mxu0 0
        %1001 = vmatpush2.bf16.msra.mxu0 0
        %1002 = vmatprep.subr.bf16.mxu0 0
        %1003 = vmatpush2.bf16.msra.mxu0 0
        %1004 = vmatprep.mubr.bf16.mxu0 0
        %1005 = vmatmul.mubr.bf16.gmra.mxu0 %v949
        %v1006 = vpop.f32.mrf.mxu0
        %v1007 = vadd.f32 0.0, %v1006
        %v1008 = vpop.f32.mrf.mxu0
        %v1009 = vadd.f32 0.0, %v1008
        %v1010 = vpop.f32.mrf.mxu0
        %v1011 = vadd.f32 0.0, %v1010
        %v1012 = vpop.f32.mrf.mxu0
        %v1013 = vadd.f32 0.0, %v1012
        %1014 = vmatprep.mubr.bf16.mxu0 0
        %1015 = vmatmul.mubr.bf16.gmra.mxu0 %v952
        %v1016 = vpop.f32.mrf.mxu0
        %v1017 = vadd.f32 0.0, %v1016
        %v1018 = vpop.f32.mrf.mxu0
        %v1019 = vadd.f32 0.0, %v1018
        %v1020 = vpop.f32.mrf.mxu0
        %v1021 = vadd.f32 0.0, %v1020
        %v1022 = vpop.f32.mrf.mxu0
        %v1023 = vadd.f32 0.0, %v1022
        %1024 = vmatprep.mubr.bf16.mxu0 0
        %1025 = vmatmul.mubr.bf16.gmra.mxu0 %v955
        %v1026 = vpop.f32.mrf.mxu0
        %v1027 = vadd.f32 0.0, %v1026
        %v1028 = vpop.f32.mrf.mxu0
        %v1029 = vadd.f32 0.0, %v1028
        %v1030 = vpop.f32.mrf.mxu0
        %v1031 = vadd.f32 0.0, %v1030
        %v1032 = vpop.f32.mrf.mxu0
        %v1033 = vadd.f32 0.0, %v1032
        %1034 = vmatprep.mubr.bf16.mxu0 0
        %1035 = vmatmul.mubr.bf16.gmra.mxu0 %v958
        %v1036 = vpop.f32.mrf.mxu0
        %v1037 = vadd.f32 0.0, %v1036
        %v1038 = vpop.f32.mrf.mxu0
        %v1039 = vadd.f32 0.0, %v1038
        %v1040 = vpop.f32.mrf.mxu0
        %v1041 = vadd.f32 0.0, %v1040
        %v1042 = vpop.f32.mrf.mxu0
        %v1043 = vadd.f32 0.0, %v1042
        %1044 = vmatprep.mubr.bf16.mxu0 0
        %1045 = vmatmul.mubr.bf16.gmra.mxu0 %v961
        %v1046 = vpop.f32.mrf.mxu0
        %v1047 = vadd.f32 0.0, %v1046
        %v1048 = vpop.f32.mrf.mxu0
        %v1049 = vadd.f32 0.0, %v1048
        %v1050 = vpop.f32.mrf.mxu0
        %v1051 = vadd.f32 0.0, %v1050
        %v1052 = vpop.f32.mrf.mxu0
        %v1053 = vadd.f32 0.0, %v1052
        %1054 = vmatprep.mubr.bf16.mxu0 0
        %1055 = vmatmul.mubr.bf16.gmra.mxu0 %v964
        %v1056 = vpop.f32.mrf.mxu0
        %v1057 = vadd.f32 0.0, %v1056
        %v1058 = vpop.f32.mrf.mxu0
        %v1059 = vadd.f32 0.0, %v1058
        %v1060 = vpop.f32.mrf.mxu0
        %v1061 = vadd.f32 0.0, %v1060
        %v1062 = vpop.f32.mrf.mxu0
        %v1063 = vadd.f32 0.0, %v1062
        %1064 = vmatprep.mubr.bf16.mxu0 0
        %1065 = vmatmul.mubr.bf16.gmra.mxu0 %v967
        %v1066 = vpop.f32.mrf.mxu0
        %v1067 = vadd.f32 0.0, %v1066
        %v1068 = vpop.f32.mrf.mxu0
        %v1069 = vadd.f32 0.0, %v1068
        %v1070 = vpop.f32.mrf.mxu0
        %v1071 = vadd.f32 0.0, %v1070
        %v1072 = vpop.f32.mrf.mxu0
        %v1073 = vadd.f32 0.0, %v1072
        %1074 = vmatprep.mubr.bf16.mxu0 0
        %1075 = vmatmul.mubr.bf16.gmra.mxu0 %v970
        %v1076 = vpop.f32.mrf.mxu0
        %v1077 = vadd.f32 0.0, %v1076
        %v1078 = vpop.f32.mrf.mxu0
        %v1079 = vadd.f32 0.0, %v1078
        %v1080 = vpop.f32.mrf.mxu0
        %v1081 = vadd.f32 0.0, %v1080
        %v1082 = vpop.f32.mrf.mxu0
        %v1083 = vadd.f32 0.0, %v1082
        %1084 = vdwg.mxu0
        %v1085 = vadd.f32 %v866, %v1007
        %v1086 = vadd.f32 %v867, %v1009
        %v1087 = vadd.f32 %v868, %v1011
        %v1088 = vadd.f32 %v869, %v1013
        %v1089 = vadd.f32 %v870, %v1017
        %v1090 = vadd.f32 %v871, %v1019
        %v1091 = vadd.f32 %v872, %v1021
        %v1092 = vadd.f32 %v873, %v1023
        %v1093 = vadd.f32 %v874, %v1027
        %v1094 = vadd.f32 %v875, %v1029
        %v1095 = vadd.f32 %v876, %v1031
        %v1096 = vadd.f32 %v877, %v1033
        %v1097 = vadd.f32 %v878, %v1037
        %v1098 = vadd.f32 %v879, %v1039
        %v1099 = vadd.f32 %v880, %v1041
        %v1100 = vadd.f32 %v881, %v1043
        %v1101 = vadd.f32 %v882, %v1047
        %v1102 = vadd.f32 %v883, %v1049
        %v1103 = vadd.f32 %v884, %v1051
        %v1104 = vadd.f32 %v885, %v1053
        %v1105 = vadd.f32 %v886, %v1057
        %v1106 = vadd.f32 %v887, %v1059
        %v1107 = vadd.f32 %v888, %v1061
        %v1108 = vadd.f32 %v889, %v1063
        %v1109 = vadd.f32 %v890, %v1067
        %v1110 = vadd.f32 %v891, %v1069
        %v1111 = vadd.f32 %v892, %v1071
        %v1112 = vadd.f32 %v893, %v1073
        %v1113 = vadd.f32 %v894, %v1077
        %v1114 = vadd.f32 %v895, %v1079
        %v1115 = vadd.f32 %v896, %v1081
        %v1116 = vadd.f32 %v897, %v1083
        %1117 = vxpose.xlu0.b32.start [1/16] %v1085, 128
        %1118 = vxpose.xlu0.b32.cont [2/16] %v1087, 128
        %1119 = vxpose.xlu0.b32.cont [3/16] %v1089, 128
        %1120 = vxpose.xlu0.b32.cont [4/16] %v1091, 128
        %1121 = vxpose.xlu0.b32.cont [5/16] %v1093, 128
        %1122 = vxpose.xlu0.b32.cont [6/16] %v1095, 128
        %1123 = vxpose.xlu0.b32.cont [7/16] %v1097, 128
        %1124 = vxpose.xlu0.b32.cont [8/16] %v1099, 128
        %1125 = vxpose.xlu0.b32.cont [9/16] %v1101, 128
        %1126 = vxpose.xlu0.b32.cont [10/16] %v1103, 128
        %1127 = vxpose.xlu0.b32.cont [11/16] %v1105, 128
        %1128 = vxpose.xlu0.b32.cont [12/16] %v1107, 128
        %1129 = vxpose.xlu0.b32.cont [13/16] %v1109, 128
        %1130 = vxpose.xlu0.b32.cont [14/16] %v1111, 128
        %1131 = vxpose.xlu0.b32.cont [15/16] %v1113, 128
        %1132 = vxpose.xlu0.b32.end [16/16] %v1115, 128
        %v1133 = vpop.trf.xlu0
        %v1134 = vpop.trf.xlu0
        %v1135 = vpop.trf.xlu0
        %v1136 = vpop.trf.xlu0
        %v1137 = vpop.trf.xlu0
        %v1138 = vpop.trf.xlu0
        %v1139 = vpop.trf.xlu0
        %v1140 = vpop.trf.xlu0
        %v1141 = vpop.trf.xlu0
        %v1142 = vpop.trf.xlu0
        %v1143 = vpop.trf.xlu0
        %v1144 = vpop.trf.xlu0
        %v1145 = vpop.trf.xlu0
        %v1146 = vpop.trf.xlu0
        %v1147 = vpop.trf.xlu0
        %v1148 = vpop.trf.xlu0
        %1149 = vxpose.xlu0.b32.start [1/16] %v1086, 128
        %1150 = vxpose.xlu0.b32.cont [2/16] %v1088, 128
        %1151 = vxpose.xlu0.b32.cont [3/16] %v1090, 128
        %1152 = vxpose.xlu0.b32.cont [4/16] %v1092, 128
        %1153 = vxpose.xlu0.b32.cont [5/16] %v1094, 128
        %1154 = vxpose.xlu0.b32.cont [6/16] %v1096, 128
        %1155 = vxpose.xlu0.b32.cont [7/16] %v1098, 128
        %1156 = vxpose.xlu0.b32.cont [8/16] %v1100, 128
        %1157 = vxpose.xlu0.b32.cont [9/16] %v1102, 128
        %1158 = vxpose.xlu0.b32.cont [10/16] %v1104, 128
        %1159 = vxpose.xlu0.b32.cont [11/16] %v1106, 128
        %1160 = vxpose.xlu0.b32.cont [12/16] %v1108, 128
        %1161 = vxpose.xlu0.b32.cont [13/16] %v1110, 128
        %1162 = vxpose.xlu0.b32.cont [14/16] %v1112, 128
        %1163 = vxpose.xlu0.b32.cont [15/16] %v1114, 128
        %1164 = vxpose.xlu0.b32.end [16/16] %v1116, 128
        %v1165 = vpop.trf.xlu0
        %v1166 = vpop.trf.xlu0
        %v1167 = vpop.trf.xlu0
        %v1168 = vpop.trf.xlu0
        %v1169 = vpop.trf.xlu0
        %v1170 = vpop.trf.xlu0
        %v1171 = vpop.trf.xlu0
        %v1172 = vpop.trf.xlu0
        %v1173 = vpop.trf.xlu0
        %v1174 = vpop.trf.xlu0
        %v1175 = vpop.trf.xlu0
        %v1176 = vpop.trf.xlu0
        %v1177 = vpop.trf.xlu0
        %v1178 = vpop.trf.xlu0
        %v1179 = vpop.trf.xlu0
        %v1180 = vpop.trf.xlu0
        %1181 = vst [vmem:[%s271] sm:$0xff] %v1133
        %1182 = vst [vmem:[%s271 + $0x8] sm:$0xff] %v1134
        %1183 = vst [vmem:[%s271 + $0x10] sm:$0xff] %v1135
        %1184 = vst [vmem:[%s271 + $0x18] sm:$0xff] %v1136
        %1185 = vst [vmem:[%s271 + $0x20] sm:$0xff] %v1137
        %1186 = vst [vmem:[%s271 + $0x28] sm:$0xff] %v1138
        %1187 = vst [vmem:[%s271 + $0x30] sm:$0xff] %v1139
        %1188 = vst [vmem:[%s271 + $0x38] sm:$0xff] %v1140
        %1189 = vst [vmem:[%s271 + $0x40] sm:$0xff] %v1141
        %1190 = vst [vmem:[%s271 + $0x48] sm:$0xff] %v1142
        %1191 = vst [vmem:[%s271 + $0x50] sm:$0xff] %v1143
        %1192 = vst [vmem:[%s271 + $0x58] sm:$0xff] %v1144
        %1193 = vst [vmem:[%s271 + $0x60] sm:$0xff] %v1145
        %1194 = vst [vmem:[%s271 + $0x68] sm:$0xff] %v1146
        %1195 = vst [vmem:[%s271 + $0x70] sm:$0xff] %v1147
        %1196 = vst [vmem:[%s271 + $0x78] sm:$0xff] %v1148
        %1197 = vst [vmem:[%s278] sm:$0xff] %v1165
        %1198 = vst [vmem:[%s278 + $0x8] sm:$0xff] %v1166
        %1199 = vst [vmem:[%s278 + $0x10] sm:$0xff] %v1167
        %1200 = vst [vmem:[%s278 + $0x18] sm:$0xff] %v1168
        %1201 = vst [vmem:[%s278 + $0x20] sm:$0xff] %v1169
        %1202 = vst [vmem:[%s278 + $0x28] sm:$0xff] %v1170
        %1203 = vst [vmem:[%s278 + $0x30] sm:$0xff] %v1171
        %1204 = vst [vmem:[%s278 + $0x38] sm:$0xff] %v1172
        %1205 = vst [vmem:[%s278 + $0x40] sm:$0xff] %v1173
        %1206 = vst [vmem:[%s278 + $0x48] sm:$0xff] %v1174
        %1207 = vst [vmem:[%s278 + $0x50] sm:$0xff] %v1175
        %1208 = vst [vmem:[%s278 + $0x58] sm:$0xff] %v1176
        %1209 = vst [vmem:[%s278 + $0x60] sm:$0xff] %v1177
        %1210 = vst [vmem:[%s278 + $0x68] sm:$0xff] %v1178
        %1211 = vst [vmem:[%s278 + $0x70] sm:$0xff] %v1179
        %1212 = vst [vmem:[%s278 + $0x78] sm:$0xff] %v1180
        %v1213 = vmul.f32 %v1133, %v1133
        %v1214 = vmul.f32 %v1134, %v1134
        %v1215 = vmul.f32 %v1135, %v1135
        %v1216 = vmul.f32 %v1136, %v1136
        %v1217 = vmul.f32 %v1137, %v1137
        %v1218 = vmul.f32 %v1138, %v1138
        %v1219 = vmul.f32 %v1139, %v1139
        %v1220 = vmul.f32 %v1140, %v1140
        %v1221 = vmul.f32 %v1141, %v1141
        %v1222 = vmul.f32 %v1142, %v1142
        %v1223 = vmul.f32 %v1143, %v1143
        %v1224 = vmul.f32 %v1144, %v1144
        %v1225 = vmul.f32 %v1145, %v1145
        %v1226 = vmul.f32 %v1146, %v1146
        %v1227 = vmul.f32 %v1147, %v1147
        %v1228 = vmul.f32 %v1148, %v1148
        %v1229 = vmul.f32 %v1165, %v1165
        %v1230 = vmul.f32 %v1166, %v1166
        %v1231 = vmul.f32 %v1167, %v1167
        %v1232 = vmul.f32 %v1168, %v1168
        %v1233 = vmul.f32 %v1169, %v1169
        %v1234 = vmul.f32 %v1170, %v1170
        %v1235 = vmul.f32 %v1171, %v1171
        %v1236 = vmul.f32 %v1172, %v1172
        %v1237 = vmul.f32 %v1173, %v1173
        %v1238 = vmul.f32 %v1174, %v1174
        %v1239 = vmul.f32 %v1175, %v1175
        %v1240 = vmul.f32 %v1176, %v1176
        %v1241 = vmul.f32 %v1177, %v1177
        %v1242 = vmul.f32 %v1178, %v1178
        %v1243 = vmul.f32 %v1179, %v1179
        %v1244 = vmul.f32 %v1180, %v1180
        %v1245 = vadd.f32 %v1213, %v1229
        %v1246 = vadd.f32 %v1214, %v1230
        %v1247 = vadd.f32 %v1215, %v1231
        %v1248 = vadd.f32 %v1216, %v1232
        %v1249 = vadd.f32 %v1217, %v1233
        %v1250 = vadd.f32 %v1218, %v1234
        %v1251 = vadd.f32 %v1219, %v1235
        %v1252 = vadd.f32 %v1220, %v1236
        %v1253 = vadd.f32 %v1221, %v1237
        %v1254 = vadd.f32 %v1222, %v1238
        %v1255 = vadd.f32 %v1223, %v1239
        %v1256 = vadd.f32 %v1224, %v1240
        %v1257 = vadd.f32 %v1225, %v1241
        %v1258 = vadd.f32 %v1226, %v1242
        %v1259 = vadd.f32 %v1227, %v1243
        %v1260 = vadd.f32 %v1228, %v1244
        %v1261 = vadd.f32 %v1245, 1e-07
        %v1262 = vadd.f32 %v1246, 1e-07
        %v1263 = vadd.f32 %v1247, 1e-07
        %v1264 = vadd.f32 %v1248, 1e-07
        %v1265 = vadd.f32 %v1249, 1e-07
        %v1266 = vadd.f32 %v1250, 1e-07
        %v1267 = vadd.f32 %v1251, 1e-07
        %v1268 = vadd.f32 %v1252, 1e-07
        %v1269 = vadd.f32 %v1253, 1e-07
        %v1270 = vadd.f32 %v1254, 1e-07
        %v1271 = vadd.f32 %v1255, 1e-07
        %v1272 = vadd.f32 %v1256, 1e-07
        %v1273 = vadd.f32 %v1257, 1e-07
        %v1274 = vadd.f32 %v1258, 1e-07
        %v1275 = vadd.f32 %v1259, 1e-07
        %v1276 = vadd.f32 %v1260, 1e-07
        %v1277 = vrsqrt.pop %v1261
        %v1278 = vmul.f32 %v1261, %v1277
        %vm1279 = vcmp.eq.f32.partialorder %v1261, inf
        %v1280 = vsel %vm1279, %v1261, %v1278
        %vm1281 = vcmp.eq.f32.partialorder %v1261, 0.0
        %v1282 = vand.u32 %v1261, 2147483648
        %v1283 = vsel %vm1281, %v1282, %v1280
        %v1284 = vrsqrt.pop %v1262
        %v1285 = vmul.f32 %v1262, %v1284
        %vm1286 = vcmp.eq.f32.partialorder %v1262, inf
        %v1287 = vsel %vm1286, %v1262, %v1285
        %vm1288 = vcmp.eq.f32.partialorder %v1262, 0.0
        %v1289 = vand.u32 %v1262, 2147483648
        %v1290 = vsel %vm1288, %v1289, %v1287
        %v1291 = vrsqrt.pop %v1263
        %v1292 = vmul.f32 %v1263, %v1291
        %vm1293 = vcmp.eq.f32.partialorder %v1263, inf
        %v1294 = vsel %vm1293, %v1263, %v1292
        %vm1295 = vcmp.eq.f32.partialorder %v1263, 0.0
        %v1296 = vand.u32 %v1263, 2147483648
        %v1297 = vsel %vm1295, %v1296, %v1294
        %v1298 = vrsqrt.pop %v1264
        %v1299 = vmul.f32 %v1264, %v1298
        %vm1300 = vcmp.eq.f32.partialorder %v1264, inf
        %v1301 = vsel %vm1300, %v1264, %v1299
        %vm1302 = vcmp.eq.f32.partialorder %v1264, 0.0
        %v1303 = vand.u32 %v1264, 2147483648
        %v1304 = vsel %vm1302, %v1303, %v1301
        %v1305 = vrsqrt.pop %v1265
        %v1306 = vmul.f32 %v1265, %v1305
        %vm1307 = vcmp.eq.f32.partialorder %v1265, inf
        %v1308 = vsel %vm1307, %v1265, %v1306
        %vm1309 = vcmp.eq.f32.partialorder %v1265, 0.0
        %v1310 = vand.u32 %v1265, 2147483648
        %v1311 = vsel %vm1309, %v1310, %v1308
        %v1312 = vrsqrt.pop %v1266
        %v1313 = vmul.f32 %v1266, %v1312
        %vm1314 = vcmp.eq.f32.partialorder %v1266, inf
        %v1315 = vsel %vm1314, %v1266, %v1313
        %vm1316 = vcmp.eq.f32.partialorder %v1266, 0.0
        %v1317 = vand.u32 %v1266, 2147483648
        %v1318 = vsel %vm1316, %v1317, %v1315
        %v1319 = vrsqrt.pop %v1267
        %v1320 = vmul.f32 %v1267, %v1319
        %vm1321 = vcmp.eq.f32.partialorder %v1267, inf
        %v1322 = vsel %vm1321, %v1267, %v1320
        %vm1323 = vcmp.eq.f32.partialorder %v1267, 0.0
        %v1324 = vand.u32 %v1267, 2147483648
        %v1325 = vsel %vm1323, %v1324, %v1322
        %v1326 = vrsqrt.pop %v1268
        %v1327 = vmul.f32 %v1268, %v1326
        %vm1328 = vcmp.eq.f32.partialorder %v1268, inf
        %v1329 = vsel %vm1328, %v1268, %v1327
        %vm1330 = vcmp.eq.f32.partialorder %v1268, 0.0
        %v1331 = vand.u32 %v1268, 2147483648
        %v1332 = vsel %vm1330, %v1331, %v1329
        %v1333 = vrsqrt.pop %v1269
        %v1334 = vmul.f32 %v1269, %v1333
        %vm1335 = vcmp.eq.f32.partialorder %v1269, inf
        %v1336 = vsel %vm1335, %v1269, %v1334
        %vm1337 = vcmp.eq.f32.partialorder %v1269, 0.0
        %v1338 = vand.u32 %v1269, 2147483648
        %v1339 = vsel %vm1337, %v1338, %v1336
        %v1340 = vrsqrt.pop %v1270
        %v1341 = vmul.f32 %v1270, %v1340
        %vm1342 = vcmp.eq.f32.partialorder %v1270, inf
        %v1343 = vsel %vm1342, %v1270, %v1341
        %vm1344 = vcmp.eq.f32.partialorder %v1270, 0.0
        %v1345 = vand.u32 %v1270, 2147483648
        %v1346 = vsel %vm1344, %v1345, %v1343
        %v1347 = vrsqrt.pop %v1271
        %v1348 = vmul.f32 %v1271, %v1347
        %vm1349 = vcmp.eq.f32.partialorder %v1271, inf
        %v1350 = vsel %vm1349, %v1271, %v1348
        %vm1351 = vcmp.eq.f32.partialorder %v1271, 0.0
        %v1352 = vand.u32 %v1271, 2147483648
        %v1353 = vsel %vm1351, %v1352, %v1350
        %v1354 = vrsqrt.pop %v1272
        %v1355 = vmul.f32 %v1272, %v1354
        %vm1356 = vcmp.eq.f32.partialorder %v1272, inf
        %v1357 = vsel %vm1356, %v1272, %v1355
        %vm1358 = vcmp.eq.f32.partialorder %v1272, 0.0
        %v1359 = vand.u32 %v1272, 2147483648
        %v1360 = vsel %vm1358, %v1359, %v1357
        %v1361 = vrsqrt.pop %v1273
        %v1362 = vmul.f32 %v1273, %v1361
        %vm1363 = vcmp.eq.f32.partialorder %v1273, inf
        %v1364 = vsel %vm1363, %v1273, %v1362
        %vm1365 = vcmp.eq.f32.partialorder %v1273, 0.0
        %v1366 = vand.u32 %v1273, 2147483648
        %v1367 = vsel %vm1365, %v1366, %v1364
        %v1368 = vrsqrt.pop %v1274
        %v1369 = vmul.f32 %v1274, %v1368
        %vm1370 = vcmp.eq.f32.partialorder %v1274, inf
        %v1371 = vsel %vm1370, %v1274, %v1369
        %vm1372 = vcmp.eq.f32.partialorder %v1274, 0.0
        %v1373 = vand.u32 %v1274, 2147483648
        %v1374 = vsel %vm1372, %v1373, %v1371
        %v1375 = vrsqrt.pop %v1275
        %v1376 = vmul.f32 %v1275, %v1375
        %vm1377 = vcmp.eq.f32.partialorder %v1275, inf
        %v1378 = vsel %vm1377, %v1275, %v1376
        %vm1379 = vcmp.eq.f32.partialorder %v1275, 0.0
        %v1380 = vand.u32 %v1275, 2147483648
        %v1381 = vsel %vm1379, %v1380, %v1378
        %v1382 = vrsqrt.pop %v1276
        %v1383 = vmul.f32 %v1276, %v1382
        %vm1384 = vcmp.eq.f32.partialorder %v1276, inf
        %v1385 = vsel %vm1384, %v1276, %v1383
        %vm1386 = vcmp.eq.f32.partialorder %v1276, 0.0
        %v1387 = vand.u32 %v1276, 2147483648
        %v1388 = vsel %vm1386, %v1387, %v1385
        %1389 = vst [vmem:[%s285] sm:$0xff] %v1283
        %1390 = vst [vmem:[%s285 + $0x8] sm:$0xff] %v1290
        %1391 = vst [vmem:[%s285 + $0x10] sm:$0xff] %v1297
        %1392 = vst [vmem:[%s285 + $0x18] sm:$0xff] %v1304
        %1393 = vst [vmem:[%s285 + $0x20] sm:$0xff] %v1311
        %1394 = vst [vmem:[%s285 + $0x28] sm:$0xff] %v1318
        %1395 = vst [vmem:[%s285 + $0x30] sm:$0xff] %v1325
        %1396 = vst [vmem:[%s285 + $0x38] sm:$0xff] %v1332
        %1397 = vst [vmem:[%s285 + $0x40] sm:$0xff] %v1339
        %1398 = vst [vmem:[%s285 + $0x48] sm:$0xff] %v1346
        %1399 = vst [vmem:[%s285 + $0x50] sm:$0xff] %v1353
        %1400 = vst [vmem:[%s285 + $0x58] sm:$0xff] %v1360
        %1401 = vst [vmem:[%s285 + $0x60] sm:$0xff] %v1367
        %1402 = vst [vmem:[%s285 + $0x68] sm:$0xff] %v1374
        %1403 = vst [vmem:[%s285 + $0x70] sm:$0xff] %v1381
        %1404 = vst [vmem:[%s285 + $0x78] sm:$0xff] %v1388
        %s1405 = sand.u32 %s122, 1
        %s1406 = scalar_lea.sflag [#allocation3], %s1405
        %s1407 = sand.u32 %s122, 1
        %s1408 = smul.addr %s1407, 128
        %s1409 = scalar_lea.vmem [#allocation2], %s1408
        %s1410 = sand.u32 %s23, 1
        %s1411 = scalar_lea.sflag [#allocation5], %s1410
        %s1412 = sand.u32 %s150, 1
        %s1413 = smul.addr %s1412, 128
        %s1414 = scalar_lea.vmem [#allocation4], %s1413
        %s1415 = sand.u32 %s23, 1
        %s1416 = scalar_lea.sflag [#allocation5], %s1415
        %s1417 = sand.u32 %s178, 1
        %s1418 = smul.addr %s1417, 128
        %s1419 = scalar_lea.vmem [#allocation6], %s1418
        // Predicated region
        $region33: #{tpu_custom_call.1} parent=31 // pred_check
          %p1420 = pneg %p132
        $region34: #{tpu_custom_call.1} parent=31 // pred_check_branch
          %1422 = sbr.rel (%p1420) target = $region36
        $region35: #{tpu_custom_call.1} parent=31 // pred_region
          %s1424 = ssub.s32 2048, 2048
          %1425 = vsyncadd %s1406, %s1424
          %s1426 = smul.addr %s27, 16
          %s1427 = sadd.s32 %s28, %s1426
          %s1428 = smul.addr %s1427, 128
          %s1429 = scalar_lea.hbm %s3, %s1428
          %s1430 = sshll.u32 %s1409, 4
          %s1431 = int_to_ptr.vmem [resolvable:$true] %s1430
          %1436 = dma.vmem_to_hbm [thread:$0]  %s1431, 2048, %s1429, %s1406, 128, 128, 8
        $region36: #{tpu_custom_call.1} parent=31 // pred_fallthru
          _
        // Predicated region
        $region37: #{tpu_custom_call.1} parent=31 // pred_check
          %p1437 = pneg %p160
        $region38: #{tpu_custom_call.1} parent=31 // pred_check_branch
          %1439 = sbr.rel (%p1437) target = $region40
        $region39: #{tpu_custom_call.1} parent=31 // pred_region
          %s1441 = ssub.s32 2048, 2048
          %1442 = vsyncadd %s1411, %s1441
          %s1443 = smul.addr %s27, 16
          %s1444 = sadd.s32 %s28, %s1443
          %s1445 = smul.addr %s1444, 128
          %s1446 = scalar_lea.hbm %s4, %s1445
          %s1447 = sshll.u32 %s1414, 4
          %s1448 = int_to_ptr.vmem [resolvable:$true] %s1447
          %1453 = dma.vmem_to_hbm [thread:$0]  %s1448, 2048, %s1446, %s1411, 128, 128, 8
        $region40: #{tpu_custom_call.1} parent=31 // pred_fallthru
          _
        // Predicated region
        $region41: #{tpu_custom_call.1} parent=31 // pred_check
          %p1454 = pneg %p188
        $region42: #{tpu_custom_call.1} parent=31 // pred_check_branch
          %1456 = sbr.rel (%p1454) target = $region44
        $region43: #{tpu_custom_call.1} parent=31 // pred_region
          %s1458 = ssub.s32 2048, 2048
          %1459 = vsyncadd %s1416, %s1458
          %s1460 = smul.addr %s27, 16
          %s1461 = sadd.s32 %s28, %s1460
          %s1462 = smul.addr %s1461, 128
          %s1463 = scalar_lea.hbm %s5, %s1462
          %s1464 = sshll.u32 %s1419, 4
          %s1465 = int_to_ptr.vmem [resolvable:$true] %s1464
          %1470 = dma.vmem_to_hbm [thread:$0]  %s1465, 2048, %s1463, %s1416, 128, 128, 8
        $region44: #{tpu_custom_call.1} parent=31 // pred_fallthru
          _
      $region32: #{tpu_custom_call.1} parent=5 // pred_fallthru
        _
      %p1471 = scmp.le.s32.totalorder 2, %s18
      // Predicated region
      $region45: #{tpu_custom_call.1} parent=5 // pred_check
        %p1472 = pneg %p1471
      $region46: #{tpu_custom_call.1} parent=5 // pred_check_branch
        %1474 = sbr.rel (%p1472) target = $region48
      $region47: #{tpu_custom_call.1} parent=5 // pred_region
        %s1475 = ssub.s32 %s18, 2
        // Predicated region
        $region49: #{tpu_custom_call.1} parent=47 // pred_check
          %p1476 = pneg %p138
        $region50: #{tpu_custom_call.1} parent=47 // pred_check_branch
          %1478 = sbr.rel (%p1476) target = $region52
        $region51: #{tpu_custom_call.1} parent=47 // pred_region
          %s1479 = sand.u32 %s123, 1
          %s1480 = scalar_lea.sflag [#allocation3], %s1479
          %s1481 = sand.u32 %s123, 1
          %s1482 = smul.addr %s1481, 128
          %s1483 = scalar_lea.vmem [#allocation2], %s1482
          %1484 = dma.done %s1480, 2048
        $region52: #{tpu_custom_call.1} parent=47 // pred_fallthru
          _
        // Predicated region
        $region53: #{tpu_custom_call.1} parent=47 // pred_check
          %p1485 = pneg %p166
        $region54: #{tpu_custom_call.1} parent=47 // pred_check_branch
          %1487 = sbr.rel (%p1485) target = $region56
        $region55: #{tpu_custom_call.1} parent=47 // pred_region
          %s1488 = sand.u32 %s24, 1
          %s1489 = scalar_lea.sflag [#allocation5], %s1488
          %s1490 = sand.u32 %s151, 1
          %s1491 = smul.addr %s1490, 128
          %s1492 = scalar_lea.vmem [#allocation4], %s1491
          %1493 = dma.done %s1489, 2048
        $region56: #{tpu_custom_call.1} parent=47 // pred_fallthru
          _
        // Predicated region
        $region57: #{tpu_custom_call.1} parent=47 // pred_check
          %p1494 = pneg %p194
        $region58: #{tpu_custom_call.1} parent=47 // pred_check_branch
          %1496 = sbr.rel (%p1494) target = $region60
        $region59: #{tpu_custom_call.1} parent=47 // pred_region
          %s1497 = sand.u32 %s24, 1
          %s1498 = scalar_lea.sflag [#allocation5], %s1497
          %s1499 = sand.u32 %s179, 1
          %s1500 = smul.addr %s1499, 128
          %s1501 = scalar_lea.vmem [#allocation6], %s1500
          %1502 = dma.done %s1498, 2048
        $region60: #{tpu_custom_call.1} parent=47 // pred_fallthru
          _
      $region48: #{tpu_custom_call.1} parent=5 // pred_fallthru
        _
    $region6: #{tpu_custom_call.1} parent=1 // loop_footer
      %s22 = sadd.s32 1, %s18
    $region7: #{tpu_custom_call.1} parent=1 // loop_footer_branch
      %17 = sbr.rel target = $region3
    $region8: #{tpu_custom_call.1} parent=1 // loop_exit
      _
    %1503 = vsyncpa [#allocation3], 1
    %s1504 = scalar_lea.sflag [#allocation3], 1
    %1505 = vsyncpa %s1504, 1
    %1506 = vsyncpa [#allocation5], 1
    %s1507 = scalar_lea.sflag [#allocation5], 1
    %1508 = vsyncpa %s1507, 1

</llo_original>
